<compile_context>
chip_gen: v7x
topology: tpu7x:2x2x1
jax: 0.10.0
libtpu: 0.0.40
codegen_flags: <defaults>
</compile_context>

<pallas_src>
import functools

import jax
import jax.numpy as jnp
from jax import lax
from jax.experimental import pallas as pl
from jax.experimental.pallas import tpu as pltpu


_VMEM = pl.BlockSpec(memory_space=pltpu.MemorySpace.VMEM)


# ------------------------------ Fused kernel --------------------------------

def _gsr_fused_kernel(x_ref, mask_ref,
                      w1_ref, att1_ref, b1_ref,
                      w2_ref, att2_ref, b2_ref,
                      w3_ref, att3_ref, b3_ref,
                      w4_ref, att4_ref, b4_ref,
                      w5_ref, att5_ref, b5_ref,
                      wo_ref, bo_ref,
                      o_ref):
    # x:    [N, C_in]
    # mask: [N, N] additive attention mask (0 on edges incl. self-loops, -1e30 else)
    # w_i:  [C_prev, C]   att_i: [2, C] (row 0 = att_dst, row 1 = att_src)   b_i: [1, C]
    # wo:   [C, C_out]    bo: [1, C_out]     o: [N, C_out]
    mask = mask_ref[...]
    h = x_ref[...]

    layers = ((w1_ref, att1_ref, b1_ref), (w2_ref, att2_ref, b2_ref),
              (w3_ref, att3_ref, b3_ref), (w4_ref, att4_ref, b4_ref),
              (w5_ref, att5_ref, b5_ref))
    for w_ref, att_ref, b_ref in layers:
        hw = jnp.dot(h, w_ref[...], preferred_element_type=jnp.float32)        # [N, C]
        # e[i, j] = <hw[i], att_dst> + <hw[j], att_src>
        # a_dst on VPU+XLU (frees the MXU slot); a_src as a single [1,C]x[C,N] MXU push.
        a_dst = jnp.sum(hw * att_ref[0:1, :], axis=-1, keepdims=True)           # [N, 1]
        a_src = lax.dot_general(att_ref[1:2, :], hw, (((1,), (1,)), ((), ())),
                                preferred_element_type=jnp.float32)             # [1, N]
        e = a_dst + a_src                                                       # [N, N]
        e = jnp.maximum(e, 0.2 * e)                                             # leaky_relu(0.2)
        e = e + mask                                                            # non-edges -> -1e30
        m = jnp.max(e, axis=-1, keepdims=True)
        p = jnp.exp(e - m)                                                      # exactly 0 on non-edges
        denom = jnp.sum(p, axis=-1, keepdims=True)                              # >= 1 (self-loops)
        attn = p * pl.reciprocal(denom, approx=True)                            # EUP vrcp, row softmax
        h = jnp.tanh(jnp.dot(attn, hw, preferred_element_type=jnp.float32)
                     + b_ref[...])                                              # [N, C]

    o_ref[...] = (jnp.dot(h, wo_ref[...], preferred_element_type=jnp.float32)
                  + bo_ref[...])                                                # [N, C_out]


def gsr_fused(params, x, mask):
    """One pallas_call for the whole 5xGAT + Linear forward."""
    n = x.shape[0]
    c_out = params["conv_out"]["w"].shape[1]
    args = [x, mask]
    for i in range(1, 6):
        p = params[f"conv{i}"]
        att = jnp.concatenate([p["att_dst"], p["att_src"]], axis=0)             # [2, C]
        args += [p["w"], att, p["bias"]]
    args += [params["conv_out"]["w"], params["conv_out"]["b"]]
    return pl.pallas_call(
        _gsr_fused_kernel,
        out_shape=jax.ShapeDtypeStruct((n, c_out), jnp.float32),
        in_specs=[_VMEM] * len(args),
        out_specs=_VMEM,
    )(*args)
    # TODO(synk): for realistic N (thousands of nodes), add a query-row grid with
    # online softmax over j-tiles + BlockSpec-tiled adj to fit v7x's 64 MiB VMEM.


# ------------------------------ Model wrapper --------------------------------

def init_params(key, in_channels=35, hidden_channels=28, out_channels=1):
    """Deterministic synthetic parameters (glorot-ish scaling)."""
    params = {}
    c_in = in_channels
    for i in range(1, 6):
        key, k1, k2, k3 = jax.random.split(key, 4)
        scale = (2.0 / (c_in + hidden_channels)) ** 0.5
        params[f"conv{i}"] = dict(
            w=scale * jax.random.normal(k1, (c_in, hidden_channels), jnp.float32),
            att_src=0.1 * jax.random.normal(k2, (1, hidden_channels), jnp.float32),
            att_dst=0.1 * jax.random.normal(k3, (1, hidden_channels), jnp.float32),
            bias=jnp.zeros((1, hidden_channels), jnp.float32),
        )
        c_in = hidden_channels
    key, k1 = jax.random.split(key)
    scale = (2.0 / (hidden_channels + out_channels)) ** 0.5
    params["conv_out"] = dict(
        w=scale * jax.random.normal(k1, (hidden_channels, out_channels), jnp.float32),
        b=jnp.zeros((1, out_channels), jnp.float32),
    )
    return params


def edge_index_to_dense_adj(edge_index, num_nodes):
    """adj[i, j] = 1 iff edge j -> i exists; self loops added (as GATConv does)."""
    src, dst = edge_index
    adj = jnp.zeros((num_nodes, num_nodes), jnp.float32)
    adj = adj.at[dst, src].set(1.0)
    adj = adj.at[jnp.arange(num_nodes), jnp.arange(num_nodes)].set(1.0)
    return adj


@functools.partial(jax.jit, static_argnames=("batch_size", "node_selection"))
def gsr_no_pooling_forward(params, x, adj, batch, *, batch_size, node_selection="last"):
    # Additive attention mask, computed ONCE and reused by all 5 GAT layers.
    mask = (adj - 1.0) * jnp.float32(1e30)
    node_preds = gsr_fused(params, x, mask)

    # Per-graph node selection glue (plain JAX indexing, not a hot path).
    counts = jnp.bincount(batch, length=batch_size)
    cum = jnp.cumsum(counts)
    if node_selection == "last":
        idx = cum - 1
    elif node_selection == "first":
        idx = cum - counts
    elif isinstance(node_selection, int):
        idx = cum - counts + node_selection
    else:
        # TODO(synk): 'mean over graph nodes' branch (segment mean) not implemented.
        idx = cum - 1
    graph_preds = node_preds[idx]
    return node_preds, graph_preds


def _reference_forward(params, x, adj):
    """Pure-JAX reference (same math, no Pallas) for a correctness spot-check."""
    h = x
    for i in range(1, 6):
        p = params[f"conv{i}"]
        hw = h @ p["w"]
        a_dst = hw @ p["att_dst"].T                                  # [N, 1]
        a_src = hw @ p["att_src"].T                                  # [N, 1]
        e = a_dst + a_src.T
        e = jnp.where(e >= 0, e, 0.2 * e)
        e = jnp.where(adj > 0, e, -jnp.inf)
        attn = jax.nn.softmax(e, axis=-1)
        h = jnp.tanh(attn @ hw + p["bias"])
    return h @ params["conv_out"]["w"] + params["conv_out"]["b"]


# ----------------------------------- Main ------------------------------------

if __name__ == "__main__":
    IN_CH, HID_CH, OUT_CH = 35, 28, 1
    N_PER_GRAPH, N_GRAPHS = 8, 2
    N = N_PER_GRAPH * N_GRAPHS

    key = jax.random.PRNGKey(0)
    key, kx = jax.random.split(key)
    x = jax.random.normal(kx, (N, IN_CH), jnp.float32)

    # Two disjoint 8-node bidirectional chains (a small synthetic "molecule" batch);
    # block-diagonal adjacency keeps both graphs in one kernel invocation.
    src_list, dst_list = [], []
    for g in range(N_GRAPHS):
        base = g * N_PER_GRAPH
        for i in range(N_PER_GRAPH - 1):
            src_list += [base + i, base + i + 1]
            dst_list += [base + i + 1, base + i]
    edge_index = jnp.array([src_list, dst_list], jnp.int32)
    adj = edge_index_to_dense_adj(edge_index, N)

    batch = jnp.repeat(jnp.arange(N_GRAPHS, dtype=jnp.int32), N_PER_GRAPH)

    params = init_params(key, IN_CH, HID_CH, OUT_CH)

    node_preds, graph_preds = gsr_no_pooling_forward(
        params, x, adj, batch, batch_size=N_GRAPHS, node_selection="last")
    jax.block_until_ready((node_preds, graph_preds))

    assert node_preds.shape == (N, OUT_CH)
    assert graph_preds.shape == (N_GRAPHS, OUT_CH)
    assert jnp.all(jnp.isfinite(node_preds)) and jnp.all(jnp.isfinite(graph_preds))

    # Spot-check against the pure-JAX reference (loose tol: approx EUP reciprocal).
    ref = _reference_forward(params, x, adj)
    assert jnp.allclose(node_preds, ref, atol=1e-2, rtol=1e-2)

    print("KERNEL_OK")
</pallas_src>

<mosaic_0001>
module attributes {stable_mosaic.version = 11 : i64} {
  func.func private @main(%arg0: i32) attributes {dimension_semantics = [#tpu.dimension_semantics<core_parallel>], iteration_bounds = array<i64: 2>, tpu.core_type = #tpu.core_type<sc_scalar_subcore>, window_params = []} {
    return
  }
}

module attributes {stable_mosaic.version = 11 : i64} {
  func.func private @main(%arg0: i32) attributes {dimension_semantics = [#tpu.dimension_semantics<core_parallel>], iteration_bounds = array<i64: 2>, tpu.core_type = #tpu.core_type<sc_scalar_subcore>, window_params = []} {
    return
  }
}

module attributes {stable_mosaic.version = 11 : i64} {
  func.func @_gsr_fused_kernel(%arg0: memref<16x35xf32, #tpu.memory_space<vmem>>, %arg1: memref<16x16xf32, #tpu.memory_space<vmem>>, %arg2: memref<35x28xf32, #tpu.memory_space<vmem>>, %arg3: memref<2x28xf32, #tpu.memory_space<vmem>>, %arg4: memref<1x28xf32, #tpu.memory_space<vmem>>, %arg5: memref<28x28xf32, #tpu.memory_space<vmem>>, %arg6: memref<2x28xf32, #tpu.memory_space<vmem>>, %arg7: memref<1x28xf32, #tpu.memory_space<vmem>>, %arg8: memref<28x28xf32, #tpu.memory_space<vmem>>, %arg9: memref<2x28xf32, #tpu.memory_space<vmem>>, %arg10: memref<1x28xf32, #tpu.memory_space<vmem>>, %arg11: memref<28x28xf32, #tpu.memory_space<vmem>>, %arg12: memref<2x28xf32, #tpu.memory_space<vmem>>, %arg13: memref<1x28xf32, #tpu.memory_space<vmem>>, %arg14: memref<28x28xf32, #tpu.memory_space<vmem>>, %arg15: memref<2x28xf32, #tpu.memory_space<vmem>>, %arg16: memref<1x28xf32, #tpu.memory_space<vmem>>, %arg17: memref<28x1xf32, #tpu.memory_space<vmem>>, %arg18: memref<1x1xf32, #tpu.memory_space<vmem>>, %arg19: memref<16x1xf32, #tpu.memory_space<vmem>>) attributes {dimension_semantics = [], scalar_prefetch = 0 : i64, scratch_operands = 0 : i64, tpu.core_type = #tpu.core_type<tc>} {
    %c0 = arith.constant 0 : index
    %c0_0 = arith.constant 0 : index
    %0 = vector.load %arg1[%c0, %c0_0] : memref<16x16xf32, #tpu.memory_space<vmem>>, vector<16x16xf32>
    %c0_1 = arith.constant 0 : index
    %c0_2 = arith.constant 0 : index
    %1 = vector.load %arg0[%c0_1, %c0_2] : memref<16x35xf32, #tpu.memory_space<vmem>>, vector<16x35xf32>
    %c0_3 = arith.constant 0 : index
    %c0_4 = arith.constant 0 : index
    %2 = vector.load %arg2[%c0_3, %c0_4] : memref<35x28xf32, #tpu.memory_space<vmem>>, vector<35x28xf32>
    %cst = arith.constant dense<0.000000e+00> : vector<16x28xf32>
    %3 = tpu.matmul %1, %2, %cst {dimension_numbers = #tpu.dot_dimension_numbers<[1], [0], [0], [1], [0, 0, 1, 1], [], []>} : vector<16x35xf32>, vector<35x28xf32>, vector<16x28xf32> -> vector<16x28xf32>
    %c0_5 = arith.constant 0 : index
    %c0_6 = arith.constant 0 : index
    %4 = vector.load %arg3[%c0_5, %c0_6] : memref<2x28xf32, #tpu.memory_space<vmem>>, vector<1x28xf32>
    %5 = vector.broadcast %4 : vector<1x28xf32> to vector<16x28xf32>
    %6 = arith.mulf %3, %5 : vector<16x28xf32>
    %cst_7 = arith.constant dense<0.000000e+00> : vector<16xf32>
    %7 = vector.multi_reduction <add>, %6, %cst_7 [1] : vector<16x28xf32> to vector<16xf32>
    %8 = vector.shape_cast %7 : vector<16xf32> to vector<16x1xf32>
    %c1 = arith.constant 1 : index
    %c0_8 = arith.constant 0 : index
    %9 = vector.load %arg3[%c1, %c0_8] : memref<2x28xf32, #tpu.memory_space<vmem>>, vector<1x28xf32>
    %cst_9 = arith.constant dense<0.000000e+00> : vector<1x16xf32>
    %10 = tpu.matmul %9, %3, %cst_9 {dimension_numbers = #tpu.dot_dimension_numbers<[1], [1], [0], [0], [0, 0, 1, 0], [], []>} : vector<1x28xf32>, vector<16x28xf32>, vector<1x16xf32> -> vector<1x16xf32>
    %11 = vector.broadcast %8 : vector<16x1xf32> to vector<16x16xf32>
    %12 = vector.broadcast %10 : vector<1x16xf32> to vector<16x16xf32>
    %13 = arith.addf %11, %12 : vector<16x16xf32>
    %cst_10 = arith.constant 2.000000e-01 : f32
    %14 = vector.broadcast %cst_10 : f32 to vector<16x16xf32>
    %15 = arith.mulf %14, %13 : vector<16x16xf32>
    %16 = arith.maximumf %13, %15 : vector<16x16xf32>
    %17 = arith.addf %16, %0 : vector<16x16xf32>
    %cst_11 = arith.constant dense<0xFF800000> : vector<16xf32>
    %18 = vector.multi_reduction <maximumf>, %17, %cst_11 [1] : vector<16x16xf32> to vector<16xf32>
    %19 = vector.shape_cast %18 : vector<16xf32> to vector<16x1xf32>
    %20 = vector.broadcast %19 : vector<16x1xf32> to vector<16x16xf32>
    %21 = arith.subf %17, %20 : vector<16x16xf32>
    %22 = math.exp %21 : vector<16x16xf32>
    %cst_12 = arith.constant dense<0.000000e+00> : vector<16xf32>
    %23 = vector.multi_reduction <add>, %22, %cst_12 [1] : vector<16x16xf32> to vector<16xf32>
    %24 = vector.shape_cast %23 : vector<16xf32> to vector<16x1xf32>
    %25 = tpu.reciprocal %24 {approx = true} : vector<16x1xf32> -> vector<16x1xf32>
    %26 = vector.broadcast %25 : vector<16x1xf32> to vector<16x16xf32>
    %27 = arith.mulf %22, %26 : vector<16x16xf32>
    %cst_13 = arith.constant dense<0.000000e+00> : vector<16x28xf32>
    %28 = tpu.matmul %27, %3, %cst_13 {dimension_numbers = #tpu.dot_dimension_numbers<[1], [0], [0], [1], [0, 0, 1, 1], [], []>} : vector<16x16xf32>, vector<16x28xf32>, vector<16x28xf32> -> vector<16x28xf32>
    %c0_14 = arith.constant 0 : index
    %c0_15 = arith.constant 0 : index
    %29 = vector.load %arg4[%c0_14, %c0_15] : memref<1x28xf32, #tpu.memory_space<vmem>>, vector<1x28xf32>
    %30 = vector.broadcast %29 : vector<1x28xf32> to vector<16x28xf32>
    %31 = arith.addf %28, %30 : vector<16x28xf32>
    %32 = math.tanh %31 : vector<16x28xf32>
    %c0_16 = arith.constant 0 : index
    %c0_17 = arith.constant 0 : index
    %33 = vector.load %arg5[%c0_16, %c0_17] : memref<28x28xf32, #tpu.memory_space<vmem>>, vector<28x28xf32>
    %cst_18 = arith.constant dense<0.000000e+00> : vector<16x28xf32>
    %34 = tpu.matmul %32, %33, %cst_18 {dimension_numbers = #tpu.dot_dimension_numbers<[1], [0], [0], [1], [0, 0, 1, 1], [], []>} : vector<16x28xf32>, vector<28x28xf32>, vector<16x28xf32> -> vector<16x28xf32>
    %c0_19 = arith.constant 0 : index
    %c0_20 = arith.constant 0 : index
    %35 = vector.load %arg6[%c0_19, %c0_20] : memref<2x28xf32, #tpu.memory_space<vmem>>, vector<1x28xf32>
    %36 = vector.broadcast %35 : vector<1x28xf32> to vector<16x28xf32>
    %37 = arith.mulf %34, %36 : vector<16x28xf32>
    %cst_21 = arith.constant dense<0.000000e+00> : vector<16xf32>
    %38 = vector.multi_reduction <add>, %37, %cst_21 [1] : vector<16x28xf32> to vector<16xf32>
    %39 = vector.shape_cast %38 : vector<16xf32> to vector<16x1xf32>
    %c1_22 = arith.constant 1 : index
    %c0_23 = arith.constant 0 : index
    %40 = vector.load %arg6[%c1_22, %c0_23] : memref<2x28xf32, #tpu.memory_space<vmem>>, vector<1x28xf32>
    %cst_24 = arith.constant dense<0.000000e+00> : vector<1x16xf32>
    %41 = tpu.matmul %40, %34, %cst_24 {dimension_numbers = #tpu.dot_dimension_numbers<[1], [1], [0], [0], [0, 0, 1, 0], [], []>} : vector<1x28xf32>, vector<16x28xf32>, vector<1x16xf32> -> vector<1x16xf32>
    %42 = vector.broadcast %39 : vector<16x1xf32> to vector<16x16xf32>
    %43 = vector.broadcast %41 : vector<1x16xf32> to vector<16x16xf32>
    %44 = arith.addf %42, %43 : vector<16x16xf32>
    %cst_25 = arith.constant 2.000000e-01 : f32
    %45 = vector.broadcast %cst_25 : f32 to vector<16x16xf32>
    %46 = arith.mulf %45, %44 : vector<16x16xf32>
    %47 = arith.maximumf %44, %46 : vector<16x16xf32>
    %48 = arith.addf %47, %0 : vector<16x16xf32>
    %cst_26 = arith.constant dense<0xFF800000> : vector<16xf32>
    %49 = vector.multi_reduction <maximumf>, %48, %cst_26 [1] : vector<16x16xf32> to vector<16xf32>
    %50 = vector.shape_cast %49 : vector<16xf32> to vector<16x1xf32>
    %51 = vector.broadcast %50 : vector<16x1xf32> to vector<16x16xf32>
    %52 = arith.subf %48, %51 : vector<16x16xf32>
    %53 = math.exp %52 : vector<16x16xf32>
    %cst_27 = arith.constant dense<0.000000e+00> : vector<16xf32>
    %54 = vector.multi_reduction <add>, %53, %cst_27 [1] : vector<16x16xf32> to vector<16xf32>
    %55 = vector.shape_cast %54 : vector<16xf32> to vector<16x1xf32>
    %56 = tpu.reciprocal %55 {approx = true} : vector<16x1xf32> -> vector<16x1xf32>
    %57 = vector.broadcast %56 : vector<16x1xf32> to vector<16x16xf32>
    %58 = arith.mulf %53, %57 : vector<16x16xf32>
    %cst_28 = arith.constant dense<0.000000e+00> : vector<16x28xf32>
    %59 = tpu.matmul %58, %34, %cst_28 {dimension_numbers = #tpu.dot_dimension_numbers<[1], [0], [0], [1], [0, 0, 1, 1], [], []>} : vector<16x16xf32>, vector<16x28xf32>, vector<16x28xf32> -> vector<16x28xf32>
    %c0_29 = arith.constant 0 : index
    %c0_30 = arith.constant 0 : index
    %60 = vector.load %arg7[%c0_29, %c0_30] : memref<1x28xf32, #tpu.memory_space<vmem>>, vector<1x28xf32>
    %61 = vector.broadcast %60 : vector<1x28xf32> to vector<16x28xf32>
    %62 = arith.addf %59, %61 : vector<16x28xf32>
    %63 = math.tanh %62 : vector<16x28xf32>
    %c0_31 = arith.constant 0 : index
    %c0_32 = arith.constant 0 : index
    %64 = vector.load %arg8[%c0_31, %c0_32] : memref<28x28xf32, #tpu.memory_space<vmem>>, vector<28x28xf32>
    %cst_33 = arith.constant dense<0.000000e+00> : vector<16x28xf32>
    %65 = tpu.matmul %63, %64, %cst_33 {dimension_numbers = #tpu.dot_dimension_numbers<[1], [0], [0], [1], [0, 0, 1, 1], [], []>} : vector<16x28xf32>, vector<28x28xf32>, vector<16x28xf32> -> vector<16x28xf32>
    %c0_34 = arith.constant 0 : index
    %c0_35 = arith.constant 0 : index
    %66 = vector.load %arg9[%c0_34, %c0_35] : memref<2x28xf32, #tpu.memory_space<vmem>>, vector<1x28xf32>
    %67 = vector.broadcast %66 : vector<1x28xf32> to vector<16x28xf32>
    %68 = arith.mulf %65, %67 : vector<16x28xf32>
    %cst_36 = arith.constant dense<0.000000e+00> : vector<16xf32>
    %69 = vector.multi_reduction <add>, %68, %cst_36 [1] : vector<16x28xf32> to vector<16xf32>
    %70 = vector.shape_cast %69 : vector<16xf32> to vector<16x1xf32>
    %c1_37 = arith.constant 1 : index
    %c0_38 = arith.constant 0 : index
    %71 = vector.load %arg9[%c1_37, %c0_38] : memref<2x28xf32, #tpu.memory_space<vmem>>, vector<1x28xf32>
    %cst_39 = arith.constant dense<0.000000e+00> : vector<1x16xf32>
    %72 = tpu.matmul %71, %65, %cst_39 {dimension_numbers = #tpu.dot_dimension_numbers<[1], [1], [0], [0], [0, 0, 1, 0], [], []>} : vector<1x28xf32>, vector<16x28xf32>, vector<1x16xf32> -> vector<1x16xf32>
    %73 = vector.broadcast %70 : vector<16x1xf32> to vector<16x16xf32>
    %74 = vector.broadcast %72 : vector<1x16xf32> to vector<16x16xf32>
    %75 = arith.addf %73, %74 : vector<16x16xf32>
    %cst_40 = arith.constant 2.000000e-01 : f32
    %76 = vector.broadcast %cst_40 : f32 to vector<16x16xf32>
    %77 = arith.mulf %76, %75 : vector<16x16xf32>
    %78 = arith.maximumf %75, %77 : vector<16x16xf32>
    %79 = arith.addf %78, %0 : vector<16x16xf32>
    %cst_41 = arith.constant dense<0xFF800000> : vector<16xf32>
    %80 = vector.multi_reduction <maximumf>, %79, %cst_41 [1] : vector<16x16xf32> to vector<16xf32>
    %81 = vector.shape_cast %80 : vector<16xf32> to vector<16x1xf32>
    %82 = vector.broadcast %81 : vector<16x1xf32> to vector<16x16xf32>
    %83 = arith.subf %79, %82 : vector<16x16xf32>
    %84 = math.exp %83 : vector<16x16xf32>
    %cst_42 = arith.constant dense<0.000000e+00> : vector<16xf32>
    %85 = vector.multi_reduction <add>, %84, %cst_42 [1] : vector<16x16xf32> to vector<16xf32>
    %86 = vector.shape_cast %85 : vector<16xf32> to vector<16x1xf32>
    %87 = tpu.reciprocal %86 {approx = true} : vector<16x1xf32> -> vector<16x1xf32>
    %88 = vector.broadcast %87 : vector<16x1xf32> to vector<16x16xf32>
    %89 = arith.mulf %84, %88 : vector<16x16xf32>
    %cst_43 = arith.constant dense<0.000000e+00> : vector<16x28xf32>
    %90 = tpu.matmul %89, %65, %cst_43 {dimension_numbers = #tpu.dot_dimension_numbers<[1], [0], [0], [1], [0, 0, 1, 1], [], []>} : vector<16x16xf32>, vector<16x28xf32>, vector<16x28xf32> -> vector<16x28xf32>
    %c0_44 = arith.constant 0 : index
    %c0_45 = arith.constant 0 : index
    %91 = vector.load %arg10[%c0_44, %c0_45] : memref<1x28xf32, #tpu.memory_space<vmem>>, vector<1x28xf32>
    %92 = vector.broadcast %91 : vector<1x28xf32> to vector<16x28xf32>
    %93 = arith.addf %90, %92 : vector<16x28xf32>
    %94 = math.tanh %93 : vector<16x28xf32>
    %c0_46 = arith.constant 0 : index
    %c0_47 = arith.constant 0 : index
    %95 = vector.load %arg11[%c0_46, %c0_47] : memref<28x28xf32, #tpu.memory_space<vmem>>, vector<28x28xf32>
    %cst_48 = arith.constant dense<0.000000e+00> : vector<16x28xf32>
    %96 = tpu.matmul %94, %95, %cst_48 {dimension_numbers = #tpu.dot_dimension_numbers<[1], [0], [0], [1], [0, 0, 1, 1], [], []>} : vector<16x28xf32>, vector<28x28xf32>, vector<16x28xf32> -> vector<16x28xf32>
    %c0_49 = arith.constant 0 : index
    %c0_50 = arith.constant 0 : index
    %97 = vector.load %arg12[%c0_49, %c0_50] : memref<2x28xf32, #tpu.memory_space<vmem>>, vector<1x28xf32>
    %98 = vector.broadcast %97 : vector<1x28xf32> to vector<16x28xf32>
    %99 = arith.mulf %96, %98 : vector<16x28xf32>
    %cst_51 = arith.constant dense<0.000000e+00> : vector<16xf32>
    %100 = vector.multi_reduction <add>, %99, %cst_51 [1] : vector<16x28xf32> to vector<16xf32>
    %101 = vector.shape_cast %100 : vector<16xf32> to vector<16x1xf32>
    %c1_52 = arith.constant 1 : index
    %c0_53 = arith.constant 0 : index
    %102 = vector.load %arg12[%c1_52, %c0_53] : memref<2x28xf32, #tpu.memory_space<vmem>>, vector<1x28xf32>
    %cst_54 = arith.constant dense<0.000000e+00> : vector<1x16xf32>
    %103 = tpu.matmul %102, %96, %cst_54 {dimension_numbers = #tpu.dot_dimension_numbers<[1], [1], [0], [0], [0, 0, 1, 0], [], []>} : vector<1x28xf32>, vector<16x28xf32>, vector<1x16xf32> -> vector<1x16xf32>
    %104 = vector.broadcast %101 : vector<16x1xf32> to vector<16x16xf32>
    %105 = vector.broadcast %103 : vector<1x16xf32> to vector<16x16xf32>
    %106 = arith.addf %104, %105 : vector<16x16xf32>
    %cst_55 = arith.constant 2.000000e-01 : f32
    %107 = vector.broadcast %cst_55 : f32 to vector<16x16xf32>
    %108 = arith.mulf %107, %106 : vector<16x16xf32>
    %109 = arith.maximumf %106, %108 : vector<16x16xf32>
    %110 = arith.addf %109, %0 : vector<16x16xf32>
    %cst_56 = arith.constant dense<0xFF800000> : vector<16xf32>
    %111 = vector.multi_reduction <maximumf>, %110, %cst_56 [1] : vector<16x16xf32> to vector<16xf32>
    %112 = vector.shape_cast %111 : vector<16xf32> to vector<16x1xf32>
    %113 = vector.broadcast %112 : vector<16x1xf32> to vector<16x16xf32>
    %114 = arith.subf %110, %113 : vector<16x16xf32>
    %115 = math.exp %114 : vector<16x16xf32>
    %cst_57 = arith.constant dense<0.000000e+00> : vector<16xf32>
    %116 = vector.multi_reduction <add>, %115, %cst_57 [1] : vector<16x16xf32> to vector<16xf32>
    %117 = vector.shape_cast %116 : vector<16xf32> to vector<16x1xf32>
    %118 = tpu.reciprocal %117 {approx = true} : vector<16x1xf32> -> vector<16x1xf32>
    %119 = vector.broadcast %118 : vector<16x1xf32> to vector<16x16xf32>
    %120 = arith.mulf %115, %119 : vector<16x16xf32>
    %cst_58 = arith.constant dense<0.000000e+00> : vector<16x28xf32>
    %121 = tpu.matmul %120, %96, %cst_58 {dimension_numbers = #tpu.dot_dimension_numbers<[1], [0], [0], [1], [0, 0, 1, 1], [], []>} : vector<16x16xf32>, vector<16x28xf32>, vector<16x28xf32> -> vector<16x28xf32>
    %c0_59 = arith.constant 0 : index
    %c0_60 = arith.constant 0 : index
    %122 = vector.load %arg13[%c0_59, %c0_60] : memref<1x28xf32, #tpu.memory_space<vmem>>, vector<1x28xf32>
    %123 = vector.broadcast %122 : vector<1x28xf32> to vector<16x28xf32>
    %124 = arith.addf %121, %123 : vector<16x28xf32>
    %125 = math.tanh %124 : vector<16x28xf32>
    %c0_61 = arith.constant 0 : index
    %c0_62 = arith.constant 0 : index
    %126 = vector.load %arg14[%c0_61, %c0_62] : memref<28x28xf32, #tpu.memory_space<vmem>>, vector<28x28xf32>
    %cst_63 = arith.constant dense<0.000000e+00> : vector<16x28xf32>
    %127 = tpu.matmul %125, %126, %cst_63 {dimension_numbers = #tpu.dot_dimension_numbers<[1], [0], [0], [1], [0, 0, 1, 1], [], []>} : vector<16x28xf32>, vector<28x28xf32>, vector<16x28xf32> -> vector<16x28xf32>
    %c0_64 = arith.constant 0 : index
    %c0_65 = arith.constant 0 : index
    %128 = vector.load %arg15[%c0_64, %c0_65] : memref<2x28xf32, #tpu.memory_space<vmem>>, vector<1x28xf32>
    %129 = vector.broadcast %128 : vector<1x28xf32> to vector<16x28xf32>
    %130 = arith.mulf %127, %129 : vector<16x28xf32>
    %cst_66 = arith.constant dense<0.000000e+00> : vector<16xf32>
    %131 = vector.multi_reduction <add>, %130, %cst_66 [1] : vector<16x28xf32> to vector<16xf32>
    %132 = vector.shape_cast %131 : vector<16xf32> to vector<16x1xf32>
    %c1_67 = arith.constant 1 : index
    %c0_68 = arith.constant 0 : index
    %133 = vector.load %arg15[%c1_67, %c0_68] : memref<2x28xf32, #tpu.memory_space<vmem>>, vector<1x28xf32>
    %cst_69 = arith.constant dense<0.000000e+00> : vector<1x16xf32>
    %134 = tpu.matmul %133, %127, %cst_69 {dimension_numbers = #tpu.dot_dimension_numbers<[1], [1], [0], [0], [0, 0, 1, 0], [], []>} : vector<1x28xf32>, vector<16x28xf32>, vector<1x16xf32> -> vector<1x16xf32>
    %135 = vector.broadcast %132 : vector<16x1xf32> to vector<16x16xf32>
    %136 = vector.broadcast %134 : vector<1x16xf32> to vector<16x16xf32>
    %137 = arith.addf %135, %136 : vector<16x16xf32>
    %cst_70 = arith.constant 2.000000e-01 : f32
    %138 = vector.broadcast %cst_70 : f32 to vector<16x16xf32>
    %139 = arith.mulf %138, %137 : vector<16x16xf32>
    %140 = arith.maximumf %137, %139 : vector<16x16xf32>
    %141 = arith.addf %140, %0 : vector<16x16xf32>
    %cst_71 = arith.constant dense<0xFF800000> : vector<16xf32>
    %142 = vector.multi_reduction <maximumf>, %141, %cst_71 [1] : vector<16x16xf32> to vector<16xf32>
    %143 = vector.shape_cast %142 : vector<16xf32> to vector<16x1xf32>
    %144 = vector.broadcast %143 : vector<16x1xf32> to vector<16x16xf32>
    %145 = arith.subf %141, %144 : vector<16x16xf32>
    %146 = math.exp %145 : vector<16x16xf32>
    %cst_72 = arith.constant dense<0.000000e+00> : vector<16xf32>
    %147 = vector.multi_reduction <add>, %146, %cst_72 [1] : vector<16x16xf32> to vector<16xf32>
    %148 = vector.shape_cast %147 : vector<16xf32> to vector<16x1xf32>
    %149 = tpu.reciprocal %148 {approx = true} : vector<16x1xf32> -> vector<16x1xf32>
    %150 = vector.broadcast %149 : vector<16x1xf32> to vector<16x16xf32>
    %151 = arith.mulf %146, %150 : vector<16x16xf32>
    %cst_73 = arith.constant dense<0.000000e+00> : vector<16x28xf32>
    %152 = tpu.matmul %151, %127, %cst_73 {dimension_numbers = #tpu.dot_dimension_numbers<[1], [0], [0], [1], [0, 0, 1, 1], [], []>} : vector<16x16xf32>, vector<16x28xf32>, vector<16x28xf32> -> vector<16x28xf32>
    %c0_74 = arith.constant 0 : index
    %c0_75 = arith.constant 0 : index
    %153 = vector.load %arg16[%c0_74, %c0_75] : memref<1x28xf32, #tpu.memory_space<vmem>>, vector<1x28xf32>
    %154 = vector.broadcast %153 : vector<1x28xf32> to vector<16x28xf32>
    %155 = arith.addf %152, %154 : vector<16x28xf32>
    %156 = math.tanh %155 : vector<16x28xf32>
    %c0_76 = arith.constant 0 : index
    %c0_77 = arith.constant 0 : index
    %157 = vector.load %arg17[%c0_76, %c0_77] : memref<28x1xf32, #tpu.memory_space<vmem>>, vector<28x1xf32>
    %cst_78 = arith.constant dense<0.000000e+00> : vector<16x1xf32>
    %158 = tpu.matmul %156, %157, %cst_78 {dimension_numbers = #tpu.dot_dimension_numbers<[1], [0], [0], [1], [0, 0, 1, 1], [], []>} : vector<16x28xf32>, vector<28x1xf32>, vector<16x1xf32> -> vector<16x1xf32>
    %c0_79 = arith.constant 0 : index
    %c0_80 = arith.constant 0 : index
    %159 = vector.load %arg18[%c0_79, %c0_80] : memref<1x1xf32, #tpu.memory_space<vmem>>, vector<1x1xf32>
    %160 = vector.broadcast %159 : vector<1x1xf32> to vector<16x1xf32>
    %161 = arith.addf %158, %160 : vector<16x1xf32>
    %c0_81 = arith.constant 0 : index
    %c0_82 = arith.constant 0 : index
    %162 = vector.load %arg19[%c0_81, %c0_82] : memref<16x1xf32, #tpu.memory_space<vmem>>, vector<16x1xf32>
    tpu.vector_store %arg19[%c0_81, %c0_82], %161 {strides = array<i32>} : memref<16x1xf32, #tpu.memory_space<vmem>>, vector<16x1xf32>,
    return
  }
}

</mosaic_0001>

<llo_original>
// kernel: gsr_no_pooling_forward.1
$region0: #{gsr_no_pooling_forward.1}
  #allocation0 [shape = 'u32[]', space=smem, size = 0x4, offset = 0x4, fixed_abs, tag = 'smem constant byte address 0x4 - core index']
  #allocation1 [shape = 'u32[144,128]{1,0:T(1,128)}', space=vmem, size = 0x12000, scoped, tag = 'internal scratch']
  #allocation2 [shape = 'f32[1,1]{1,0:T(1,128)S(1)}', space=vmem, size = 0x200, scoped, tag = 'scoped memory for gsr_no_pooling_forward.1']
  %s0 = inlined_call_operand.vmem [shape: f32[16,35], index: 0, kind: input, shape index: {}]
  %s1 = inlined_call_operand.vmem [shape: f32[16,16], index: 1, kind: input, shape index: {}]
  %s2 = inlined_call_operand.vmem [shape: f32[35,28], index: 2, kind: input, shape index: {}]
  %s3 = inlined_call_operand.vmem [shape: f32[2,28], index: 3, kind: input, shape index: {}]
  %s4 = inlined_call_operand.vmem [shape: f32[1,28], index: 4, kind: input, shape index: {}]
  %s5 = inlined_call_operand.vmem [shape: f32[28,28], index: 5, kind: input, shape index: {}]
  %s6 = inlined_call_operand.vmem [shape: f32[2,28], index: 6, kind: input, shape index: {}]
  %s7 = inlined_call_operand.vmem [shape: f32[1,28], index: 7, kind: input, shape index: {}]
  %s8 = inlined_call_operand.vmem [shape: f32[28,28], index: 8, kind: input, shape index: {}]
  %s9 = inlined_call_operand.vmem [shape: f32[2,28], index: 9, kind: input, shape index: {}]
  %s10 = inlined_call_operand.vmem [shape: f32[1,28], index: 10, kind: input, shape index: {}]
  %s11 = inlined_call_operand.vmem [shape: f32[28,28], index: 11, kind: input, shape index: {}]
  %s12 = inlined_call_operand.vmem [shape: f32[2,28], index: 12, kind: input, shape index: {}]
  %s13 = inlined_call_operand.vmem [shape: f32[1,28], index: 13, kind: input, shape index: {}]
  %s14 = inlined_call_operand.vmem [shape: f32[28,28], index: 14, kind: input, shape index: {}]
  %s15 = inlined_call_operand.vmem [shape: f32[2,28], index: 15, kind: input, shape index: {}]
  %s16 = inlined_call_operand.vmem [shape: f32[1,28], index: 16, kind: input, shape index: {}]
  %s17 = inlined_call_operand.vmem [shape: f32[28,1], index: 17, kind: input, shape index: {}]
  %s18 = inlined_call_operand.<no memory space> [shape: f32[1,1], index: 18, kind: input, shape index: {}]
  %s19 = inlined_call_operand.vmem [shape: f32[16,1], index: 19, kind: output, shape index: {}]
  %s20 = sld [smem:[#allocation0]]
  $region86: #{gsr_no_pooling_forward.1} parent=0
    _
  %s22 = ssub.s32 1, %s20
  %s23 = scalar_select 0, %s22, %s20
  %v24 = vstv %s18
  %25 = vst [vmem:[#allocation2] sm:$0x1] %v24
  // Predicated region
  $region2: #{gsr_no_pooling_forward.1} parent=0 // pred_check
    _
  $region3: #{gsr_no_pooling_forward.1} parent=0 // pred_check_branch
    %27 = sbr.rel (0) target = $region5
  $region4: #{gsr_no_pooling_forward.1} parent=0 // pred_region
    _
  $region5: #{gsr_no_pooling_forward.1} parent=0 // pred_fallthru
    _
  // Predicated region
  $region6: #{gsr_no_pooling_forward.1} parent=0 // pred_check
    _
  $region7: #{gsr_no_pooling_forward.1} parent=0 // pred_check_branch
    %29 = sbr.rel (0) target = $region9
  $region8: #{gsr_no_pooling_forward.1} parent=0 // pred_region
    _
  $region9: #{gsr_no_pooling_forward.1} parent=0 // pred_fallthru
    _
  // Predicated region
  $region10: #{gsr_no_pooling_forward.1} parent=0 // pred_check
    _
  $region11: #{gsr_no_pooling_forward.1} parent=0 // pred_check_branch
    %31 = sbr.rel (0) target = $region13
  $region12: #{gsr_no_pooling_forward.1} parent=0 // pred_region
    _
  $region13: #{gsr_no_pooling_forward.1} parent=0 // pred_fallthru
    _
  // Predicated region
  $region14: #{gsr_no_pooling_forward.1} parent=0 // pred_check
    _
  $region15: #{gsr_no_pooling_forward.1} parent=0 // pred_check_branch
    %33 = sbr.rel (0) target = $region17
  $region16: #{gsr_no_pooling_forward.1} parent=0 // pred_region
    _
  $region17: #{gsr_no_pooling_forward.1} parent=0 // pred_fallthru
    _
  // Predicated region
  $region18: #{gsr_no_pooling_forward.1} parent=0 // pred_check
    _
  $region19: #{gsr_no_pooling_forward.1} parent=0 // pred_check_branch
    %35 = sbr.rel (0) target = $region21
  $region20: #{gsr_no_pooling_forward.1} parent=0 // pred_region
    _
  $region21: #{gsr_no_pooling_forward.1} parent=0 // pred_fallthru
    _
  // Predicated region
  $region22: #{gsr_no_pooling_forward.1} parent=0 // pred_check
    _
  $region23: #{gsr_no_pooling_forward.1} parent=0 // pred_check_branch
    %37 = sbr.rel (0) target = $region25
  $region24: #{gsr_no_pooling_forward.1} parent=0 // pred_region
    _
  $region25: #{gsr_no_pooling_forward.1} parent=0 // pred_fallthru
    _
  // Predicated region
  $region26: #{gsr_no_pooling_forward.1} parent=0 // pred_check
    _
  $region27: #{gsr_no_pooling_forward.1} parent=0 // pred_check_branch
    %39 = sbr.rel (0) target = $region29
  $region28: #{gsr_no_pooling_forward.1} parent=0 // pred_region
    _
  $region29: #{gsr_no_pooling_forward.1} parent=0 // pred_fallthru
    _
  // Predicated region
  $region30: #{gsr_no_pooling_forward.1} parent=0 // pred_check
    _
  $region31: #{gsr_no_pooling_forward.1} parent=0 // pred_check_branch
    %41 = sbr.rel (0) target = $region33
  $region32: #{gsr_no_pooling_forward.1} parent=0 // pred_region
    _
  $region33: #{gsr_no_pooling_forward.1} parent=0 // pred_fallthru
    _
  // Predicated region
  $region34: #{gsr_no_pooling_forward.1} parent=0 // pred_check
    _
  $region35: #{gsr_no_pooling_forward.1} parent=0 // pred_check_branch
    %43 = sbr.rel (0) target = $region37
  $region36: #{gsr_no_pooling_forward.1} parent=0 // pred_region
    _
  $region37: #{gsr_no_pooling_forward.1} parent=0 // pred_fallthru
    _
  // Predicated region
  $region38: #{gsr_no_pooling_forward.1} parent=0 // pred_check
    _
  $region39: #{gsr_no_pooling_forward.1} parent=0 // pred_check_branch
    %45 = sbr.rel (0) target = $region41
  $region40: #{gsr_no_pooling_forward.1} parent=0 // pred_region
    _
  $region41: #{gsr_no_pooling_forward.1} parent=0 // pred_fallthru
    _
  // Predicated region
  $region42: #{gsr_no_pooling_forward.1} parent=0 // pred_check
    _
  $region43: #{gsr_no_pooling_forward.1} parent=0 // pred_check_branch
    %47 = sbr.rel (0) target = $region45
  $region44: #{gsr_no_pooling_forward.1} parent=0 // pred_region
    _
  $region45: #{gsr_no_pooling_forward.1} parent=0 // pred_fallthru
    _
  // Predicated region
  $region46: #{gsr_no_pooling_forward.1} parent=0 // pred_check
    _
  $region47: #{gsr_no_pooling_forward.1} parent=0 // pred_check_branch
    %49 = sbr.rel (0) target = $region49
  $region48: #{gsr_no_pooling_forward.1} parent=0 // pred_region
    _
  $region49: #{gsr_no_pooling_forward.1} parent=0 // pred_fallthru
    _
  // Predicated region
  $region50: #{gsr_no_pooling_forward.1} parent=0 // pred_check
    _
  $region51: #{gsr_no_pooling_forward.1} parent=0 // pred_check_branch
    %51 = sbr.rel (0) target = $region53
  $region52: #{gsr_no_pooling_forward.1} parent=0 // pred_region
    _
  $region53: #{gsr_no_pooling_forward.1} parent=0 // pred_fallthru
    _
  // Predicated region
  $region54: #{gsr_no_pooling_forward.1} parent=0 // pred_check
    _
  $region55: #{gsr_no_pooling_forward.1} parent=0 // pred_check_branch
    %53 = sbr.rel (0) target = $region57
  $region56: #{gsr_no_pooling_forward.1} parent=0 // pred_region
    _
  $region57: #{gsr_no_pooling_forward.1} parent=0 // pred_fallthru
    _
  // Predicated region
  $region58: #{gsr_no_pooling_forward.1} parent=0 // pred_check
    _
  $region59: #{gsr_no_pooling_forward.1} parent=0 // pred_check_branch
    %55 = sbr.rel (0) target = $region61
  $region60: #{gsr_no_pooling_forward.1} parent=0 // pred_region
    _
  $region61: #{gsr_no_pooling_forward.1} parent=0 // pred_fallthru
    _
  // Predicated region
  $region62: #{gsr_no_pooling_forward.1} parent=0 // pred_check
    _
  $region63: #{gsr_no_pooling_forward.1} parent=0 // pred_check_branch
    %57 = sbr.rel (0) target = $region65
  $region64: #{gsr_no_pooling_forward.1} parent=0 // pred_region
    _
  $region65: #{gsr_no_pooling_forward.1} parent=0 // pred_fallthru
    _
  // Predicated region
  $region66: #{gsr_no_pooling_forward.1} parent=0 // pred_check
    _
  $region67: #{gsr_no_pooling_forward.1} parent=0 // pred_check_branch
    %59 = sbr.rel (0) target = $region69
  $region68: #{gsr_no_pooling_forward.1} parent=0 // pred_region
    _
  $region69: #{gsr_no_pooling_forward.1} parent=0 // pred_fallthru
    _
  // Predicated region
  $region70: #{gsr_no_pooling_forward.1} parent=0 // pred_check
    _
  $region71: #{gsr_no_pooling_forward.1} parent=0 // pred_check_branch
    %61 = sbr.rel (0) target = $region73
  $region72: #{gsr_no_pooling_forward.1} parent=0 // pred_region
    _
  $region73: #{gsr_no_pooling_forward.1} parent=0 // pred_fallthru
    _
  // Predicated region
  $region74: #{gsr_no_pooling_forward.1} parent=0 // pred_check
    _
  $region75: #{gsr_no_pooling_forward.1} parent=0 // pred_check_branch
    %63 = sbr.rel (0) target = $region77
  $region76: #{gsr_no_pooling_forward.1} parent=0 // pred_region
    _
  $region77: #{gsr_no_pooling_forward.1} parent=0 // pred_fallthru
    _
  %v64 = vld [vmem:[%s1] sm:$0xff]
  %v65 = vld [vmem:[%s1 + $0x8] sm:$0xff]
  %v66 = vld [vmem:[%s0] sm:$0xff]
  %v67 = vld [vmem:[%s0 + $0x8] sm:$0xff]
  %v68 = vld [vmem:[%s2] sm:$0xff]
  %v69 = vld [vmem:[%s2 + $0x8] sm:$0xff]
  %v70 = vld [vmem:[%s2 + $0x10] sm:$0xff]
  %v71 = vld [vmem:[%s2 + $0x18] sm:$0xff]
  %v72 = vld [vmem:[%s2 + $0x20] sm:$0x7]
  %vm73 = vcmask 285696
  %v75 = vsel %vm73, %v66, 0
  %v78 = vsel %vm73, %v67, 0
  %vm80 = vcmask 1042432
  %v82 = vsel %vm80, %v72, 0
  %84 = vmatprep.subr.mxu0 0.0
  %85 = vmatpush1.msra.mxu0 %v68
  %86 = vmatprep.subr.mxu0 0.0
  %87 = vmatpush1.msra.mxu0 %v69
  %88 = vmatprep.subr.mxu0 0.0
  %89 = vmatpush1.msra.mxu0 %v70
  %90 = vmatprep.subr.mxu0 0.0
  %91 = vmatpush1.msra.mxu0 %v71
  %92 = vmatprep.subr.mxu0 0.0
  %93 = vmatpush1.msra.mxu0 %v82
  %94 = vmatprep.subr.mxu0 0.0
  %95 = vmatpush1.msra.mxu0 0.0
  %96 = vmatprep.subr.mxu0 0.0
  %97 = vmatpush1.msra.mxu0 0.0
  %98 = vmatprep.subr.mxu0 0.0
  %99 = vmatpush1.msra.mxu0 0.0
  %100 = vmatprep.subr.mxu0 0.0
  %101 = vmatpush1.msra.mxu0 0.0
  %102 = vmatprep.subr.mxu0 0.0
  %103 = vmatpush1.msra.mxu0 0.0
  %104 = vmatprep.subr.mxu0 0.0
  %105 = vmatpush1.msra.mxu0 0.0
  %106 = vmatprep.subr.mxu0 0.0
  %107 = vmatpush1.msra.mxu0 0.0
  %108 = vmatprep.subr.mxu0 0.0
  %109 = vmatpush1.msra.mxu0 0.0
  %110 = vmatprep.subr.mxu0 0.0
  %111 = vmatpush1.msra.mxu0 0.0
  %112 = vmatprep.subr.mxu0 0.0
  %113 = vmatpush1.msra.mxu0 0.0
  %114 = vmatprep.subr.mxu0 0.0
  %115 = vmatpush1.msra.mxu0 0.0
  %116 = vmatprep.subr.mxu0 0.0
  %117 = vmatpush1.msra.mxu0 0.0
  %118 = vmatprep.subr.mxu0 0.0
  %119 = vmatpush1.msra.mxu0 0.0
  %120 = vmatprep.subr.mxu0 0.0
  %121 = vmatpush1.msra.mxu0 0.0
  %122 = vmatprep.subr.mxu0 0.0
  %123 = vmatpush1.msra.mxu0 0.0
  %124 = vmatprep.subr.mxu0 0.0
  %125 = vmatpush1.msra.mxu0 0.0
  %126 = vmatprep.subr.mxu0 0.0
  %127 = vmatpush1.msra.mxu0 0.0
  %128 = vmatprep.subr.mxu0 0.0
  %129 = vmatpush1.msra.mxu0 0.0
  %130 = vmatprep.subr.mxu0 0.0
  %131 = vmatpush1.msra.mxu0 0.0
  %132 = vmatprep.subr.mxu0 0.0
  %133 = vmatpush1.msra.mxu0 0.0
  %134 = vmatprep.subr.mxu0 0.0
  %135 = vmatpush1.msra.mxu0 0.0
  %136 = vmatprep.subr.mxu0 0.0
  %137 = vmatpush1.msra.mxu0 0.0
  %138 = vmatprep.subr.mxu0 0.0
  %139 = vmatpush1.msra.mxu0 0.0
  %140 = vmatprep.subr.mxu0 0.0
  %141 = vmatpush1.msra.mxu0 0.0
  %142 = vmatprep.subr.mxu0 0.0
  %143 = vmatpush1.msra.mxu0 0.0
  %144 = vmatprep.subr.mxu0 0.0
  %145 = vmatpush1.msra.mxu0 0.0
  %146 = vmatprep.subr.mxu0 0.0
  %147 = vmatpush1.msra.mxu0 0.0
  %148 = vmatprep.mubr.f32.mxu0 0.0
  %149 = vmatmul.mubr.f32.gmra.mrb[0].mxu0 %v75
  %v150 = vpop.f32.mrb[0].mxu0
  %v151 = vadd.f32 0.0, %v150
  %v152 = vpop.f32.mrb[0].mxu0
  %153 = vmatprep.mubr.f32.mxu0 0.0
  %154 = vmatmul.mubr.f32.gmra.mrb[0].mxu0 %v78
  %v155 = vpop.f32.mrb[0].mxu0
  %v156 = vadd.f32 0.0, %v155
  %v157 = vpop.f32.mrb[0].mxu0
  %158 = vdwg.mxu0
  %v159 = vld [vmem:[%s3] sm:$0x1]
  %v160 = vlaneseq
  %v161 = vshrl.u32 %v160, 7
  %v162 = vsub.s32 0, %v161
  %v163 = vrot.slane %v159, %v162
  %v164 = vmul.f32 %v151, %v163
  %v165 = vmul.f32 %v156, %v163
  %vm166 = vcmask 228352
  %v167 = vsel %vm166, %v164, 0.0
  %168 = vadd.xlane.f32.xlu0 %v167
  %v169 = vpop.xlane.xlu0 %168
  %v170 = vsel %vm166, %v165, 0.0
  %171 = vadd.xlane.f32.xlu0 %v170
  %v172 = vpop.xlane.xlu0 %171
  %v173 = vld [vmem:[%s3 + $0x1] sm:$0x1]
  %v175 = vsel %vm166, %v173, 0
  %v178 = vsel %vm166, %v151, 0
  %v181 = vsel %vm166, %v156, 0
  %183 = vmatprep.subr.mxu0 0.0
  %184 = vmatpush1.xpose.msra.mxu0 %v178
  %185 = vmatprep.subr.mxu0 0.0
  %186 = vmatpush1.xpose.msra.mxu0 %v181
  %187 = vmatprep.subr.mxu0 0.0
  %188 = vmatpush1.xpose.msra.mxu0 0.0
  %189 = vmatprep.subr.mxu0 0.0
  %190 = vmatpush1.xpose.msra.mxu0 0.0
  %191 = vmatprep.subr.mxu0 0.0
  %192 = vmatpush1.xpose.msra.mxu0 0.0
  %193 = vmatprep.subr.mxu0 0.0
  %194 = vmatpush1.xpose.msra.mxu0 0.0
  %195 = vmatprep.subr.mxu0 0.0
  %196 = vmatpush1.xpose.msra.mxu0 0.0
  %197 = vmatprep.subr.mxu0 0.0
  %198 = vmatpush1.xpose.msra.mxu0 0.0
  %199 = vmatprep.subr.mxu0 0.0
  %200 = vmatpush1.xpose.msra.mxu0 0.0
  %201 = vmatprep.subr.mxu0 0.0
  %202 = vmatpush1.xpose.msra.mxu0 0.0
  %203 = vmatprep.subr.mxu0 0.0
  %204 = vmatpush1.xpose.msra.mxu0 0.0
  %205 = vmatprep.subr.mxu0 0.0
  %206 = vmatpush1.xpose.msra.mxu0 0.0
  %207 = vmatprep.subr.mxu0 0.0
  %208 = vmatpush1.xpose.msra.mxu0 0.0
  %209 = vmatprep.subr.mxu0 0.0
  %210 = vmatpush1.xpose.msra.mxu0 0.0
  %211 = vmatprep.subr.mxu0 0.0
  %212 = vmatpush1.xpose.msra.mxu0 0.0
  %213 = vmatprep.subr.mxu0 0.0
  %214 = vmatpush1.xpose.msra.mxu0 0.0
  %215 = vmatprep.subr.mxu0 0.0
  %216 = vmatpush1.xpose.msra.mxu0 0.0
  %217 = vmatprep.subr.mxu0 0.0
  %218 = vmatpush1.xpose.msra.mxu0 0.0
  %219 = vmatprep.subr.mxu0 0.0
  %220 = vmatpush1.xpose.msra.mxu0 0.0
  %221 = vmatprep.subr.mxu0 0.0
  %222 = vmatpush1.xpose.msra.mxu0 0.0
  %223 = vmatprep.subr.mxu0 0.0
  %224 = vmatpush1.xpose.msra.mxu0 0.0
  %225 = vmatprep.subr.mxu0 0.0
  %226 = vmatpush1.xpose.msra.mxu0 0.0
  %227 = vmatprep.subr.mxu0 0.0
  %228 = vmatpush1.xpose.msra.mxu0 0.0
  %229 = vmatprep.subr.mxu0 0.0
  %230 = vmatpush1.xpose.msra.mxu0 0.0
  %231 = vmatprep.subr.mxu0 0.0
  %232 = vmatpush1.xpose.msra.mxu0 0.0
  %233 = vmatprep.subr.mxu0 0.0
  %234 = vmatpush1.xpose.msra.mxu0 0.0
  %235 = vmatprep.subr.mxu0 0.0
  %236 = vmatpush1.xpose.msra.mxu0 0.0
  %237 = vmatprep.subr.mxu0 0.0
  %238 = vmatpush1.xpose.msra.mxu0 0.0
  %239 = vmatprep.subr.mxu0 0.0
  %240 = vmatpush1.xpose.msra.mxu0 0.0
  %241 = vmatprep.subr.mxu0 0.0
  %242 = vmatpush1.xpose.msra.mxu0 0.0
  %243 = vmatprep.subr.mxu0 0.0
  %244 = vmatpush1.xpose.msra.mxu0 0.0
  %245 = vmatprep.subr.mxu0 0.0
  %246 = vmatpush1.xpose.msra.mxu0 0.0
  %247 = vmatprep.mubr.f32.mxu0 0.0
  %248 = vmatmul.mubr.f32.gmra.mrb[0].mxu0 %v175
  %v249 = vpop.f32.mrb[0].mxu0
  %v250 = vadd.f32 0.0, %v249
  %v251 = vpop.f32.mrb[0].mxu0
  %252 = vdwg.mxu0
  %v253 = vlaneseq
  %v254 = vshrl.u32 %v253, 7
  %v255 = vsub.s32 0, %v254
  %v256 = vrot.slane %v250, %v255
  %v257 = vadd.f32 %v169, %v256
  %v258 = vadd.f32 %v172, %v256
  %v259 = vmul.f32 %v257, 0.2
  %v260 = vmul.f32 %v258, 0.2
  %v261 = vmax.f32 %v257, %v259
  %v262 = vmax.f32 %v258, %v260
  %v263 = vadd.f32 %v261, %v64
  %v264 = vadd.f32 %v262, %v65
  %vm265 = vcmask 130048
  %v266 = vsel %vm265, %v263, -inf
  %267 = vmax.xlane.f32.xlu0 %v266
  %v268 = vpop.xlane.xlu0 %267
  %v269 = vsel %vm265, %v264, -inf
  %270 = vmax.xlane.f32.xlu0 %v269
  %v271 = vpop.xlane.xlu0 %270
  %v272 = vsub.f32 %v263, %v268
  %v273 = vsub.f32 %v264, %v271
  %v274 = vmul.f32 %v272, 1.442695
  %v275 = vpow.pop %v274
  %v276 = vmul.f32 %v273, 1.442695
  %v277 = vpow.pop %v276
  %v278 = vsel %vm265, %v275, 0.0
  %279 = vadd.xlane.f32.xlu0 %v278
  %v280 = vpop.xlane.xlu0 %279
  %v281 = vsel %vm265, %v277, 0.0
  %282 = vadd.xlane.f32.xlu0 %v281
  %v283 = vpop.xlane.xlu0 %282
  %v284 = vrcp.pop %v280
  %v285 = vrcp.pop %v283
  %v286 = vmul.f32 %v275, %v284
  %v287 = vmul.f32 %v277, %v285
  %v288 = vld [vmem:[%s4] sm:$0x1]
  %v290 = vlaneseq
  %v291 = vshrl.u32 %v290, 7
  %v292 = vsub.s32 0, %v291
  %v293 = vrot.slane %v288, %v292
  %v296 = vsel %vm265, %v286, 0
  %v299 = vsel %vm265, %v287, 0
  %301 = vmatprep.subr.mxu0 0.0
  %302 = vmatpush1.msra.mxu0 %v151
  %303 = vmatprep.subr.mxu0 0.0
  %304 = vmatpush1.msra.mxu0 %v156
  %305 = vmatprep.subr.mxu0 0.0
  %306 = vmatpush1.msra.mxu0 0.0
  %307 = vmatprep.subr.mxu0 0.0
  %308 = vmatpush1.msra.mxu0 0.0
  %309 = vmatprep.subr.mxu0 0.0
  %310 = vmatpush1.msra.mxu0 0.0
  %311 = vmatprep.subr.mxu0 0.0
  %312 = vmatpush1.msra.mxu0 0.0
  %313 = vmatprep.subr.mxu0 0.0
  %314 = vmatpush1.msra.mxu0 0.0
  %315 = vmatprep.subr.mxu0 0.0
  %316 = vmatpush1.msra.mxu0 0.0
  %317 = vmatprep.subr.mxu0 0.0
  %318 = vmatpush1.msra.mxu0 0.0
  %319 = vmatprep.subr.mxu0 0.0
  %320 = vmatpush1.msra.mxu0 0.0
  %321 = vmatprep.subr.mxu0 0.0
  %322 = vmatpush1.msra.mxu0 0.0
  %323 = vmatprep.subr.mxu0 0.0
  %324 = vmatpush1.msra.mxu0 0.0
  %325 = vmatprep.subr.mxu0 0.0
  %326 = vmatpush1.msra.mxu0 0.0
  %327 = vmatprep.subr.mxu0 0.0
  %328 = vmatpush1.msra.mxu0 0.0
  %329 = vmatprep.subr.mxu0 0.0
  %330 = vmatpush1.msra.mxu0 0.0
  %331 = vmatprep.subr.mxu0 0.0
  %332 = vmatpush1.msra.mxu0 0.0
  %333 = vmatprep.subr.mxu0 0.0
  %334 = vmatpush1.msra.mxu0 0.0
  %335 = vmatprep.subr.mxu0 0.0
  %336 = vmatpush1.msra.mxu0 0.0
  %337 = vmatprep.subr.mxu0 0.0
  %338 = vmatpush1.msra.mxu0 0.0
  %339 = vmatprep.subr.mxu0 0.0
  %340 = vmatpush1.msra.mxu0 0.0
  %341 = vmatprep.subr.mxu0 0.0
  %342 = vmatpush1.msra.mxu0 0.0
  %343 = vmatprep.subr.mxu0 0.0
  %344 = vmatpush1.msra.mxu0 0.0
  %345 = vmatprep.subr.mxu0 0.0
  %346 = vmatpush1.msra.mxu0 0.0
  %347 = vmatprep.subr.mxu0 0.0
  %348 = vmatpush1.msra.mxu0 0.0
  %349 = vmatprep.subr.mxu0 0.0
  %350 = vmatpush1.msra.mxu0 0.0
  %351 = vmatprep.subr.mxu0 0.0
  %352 = vmatpush1.msra.mxu0 0.0
  %353 = vmatprep.subr.mxu0 0.0
  %354 = vmatpush1.msra.mxu0 0.0
  %355 = vmatprep.subr.mxu0 0.0
  %356 = vmatpush1.msra.mxu0 0.0
  %357 = vmatprep.subr.mxu0 0.0
  %358 = vmatpush1.msra.mxu0 0.0
  %359 = vmatprep.subr.mxu0 0.0
  %360 = vmatpush1.msra.mxu0 0.0
  %361 = vmatprep.subr.mxu0 0.0
  %362 = vmatpush1.msra.mxu0 0.0
  %363 = vmatprep.subr.mxu0 0.0
  %364 = vmatpush1.msra.mxu0 0.0
  %365 = vmatprep.mubr.f32.mxu0 0.0
  %366 = vmatmul.mubr.f32.gmra.mrb[0].mxu0 %v296
  %v367 = vpop.f32.mrb[0].mxu0
  %v368 = vadd.f32 %v293, %v367
  %v369 = vpop.f32.mrb[0].mxu0
  %370 = vmatprep.mubr.f32.mxu0 0.0
  %371 = vmatmul.mubr.f32.gmra.mrb[0].mxu0 %v299
  %v372 = vpop.f32.mrb[0].mxu0
  %v373 = vadd.f32 %v293, %v372
  %v374 = vpop.f32.mrb[0].mxu0
  %375 = vdwg.mxu0
  %v376 = vtanh.pop %v368
  %v377 = vtanh.pop %v373
  %v378 = vld [vmem:[%s5] sm:$0xff]
  %v379 = vld [vmem:[%s5 + $0x8] sm:$0xff]
  %v380 = vld [vmem:[%s5 + $0x10] sm:$0xff]
  %v381 = vld [vmem:[%s5 + $0x18] sm:$0xf]
  %v383 = vsel %vm166, %v376, 0
  %v386 = vsel %vm166, %v377, 0
  %vm388 = vcmask 1043456
  %v390 = vsel %vm388, %v381, 0
  %392 = vmatprep.subr.mxu0 0.0
  %393 = vmatpush1.msra.mxu0 %v378
  %394 = vmatprep.subr.mxu0 0.0
  %395 = vmatpush1.msra.mxu0 %v379
  %396 = vmatprep.subr.mxu0 0.0
  %397 = vmatpush1.msra.mxu0 %v380
  %398 = vmatprep.subr.mxu0 0.0
  %399 = vmatpush1.msra.mxu0 %v390
  %400 = vmatprep.subr.mxu0 0.0
  %401 = vmatpush1.msra.mxu0 0.0
  %402 = vmatprep.subr.mxu0 0.0
  %403 = vmatpush1.msra.mxu0 0.0
  %404 = vmatprep.subr.mxu0 0.0
  %405 = vmatpush1.msra.mxu0 0.0
  %406 = vmatprep.subr.mxu0 0.0
  %407 = vmatpush1.msra.mxu0 0.0
  %408 = vmatprep.subr.mxu0 0.0
  %409 = vmatpush1.msra.mxu0 0.0
  %410 = vmatprep.subr.mxu0 0.0
  %411 = vmatpush1.msra.mxu0 0.0
  %412 = vmatprep.subr.mxu0 0.0
  %413 = vmatpush1.msra.mxu0 0.0
  %414 = vmatprep.subr.mxu0 0.0
  %415 = vmatpush1.msra.mxu0 0.0
  %416 = vmatprep.subr.mxu0 0.0
  %417 = vmatpush1.msra.mxu0 0.0
  %418 = vmatprep.subr.mxu0 0.0
  %419 = vmatpush1.msra.mxu0 0.0
  %420 = vmatprep.subr.mxu0 0.0
  %421 = vmatpush1.msra.mxu0 0.0
  %422 = vmatprep.subr.mxu0 0.0
  %423 = vmatpush1.msra.mxu0 0.0
  %424 = vmatprep.subr.mxu0 0.0
  %425 = vmatpush1.msra.mxu0 0.0
  %426 = vmatprep.subr.mxu0 0.0
  %427 = vmatpush1.msra.mxu0 0.0
  %428 = vmatprep.subr.mxu0 0.0
  %429 = vmatpush1.msra.mxu0 0.0
  %430 = vmatprep.subr.mxu0 0.0
  %431 = vmatpush1.msra.mxu0 0.0
  %432 = vmatprep.subr.mxu0 0.0
  %433 = vmatpush1.msra.mxu0 0.0
  %434 = vmatprep.subr.mxu0 0.0
  %435 = vmatpush1.msra.mxu0 0.0
  %436 = vmatprep.subr.mxu0 0.0
  %437 = vmatpush1.msra.mxu0 0.0
  %438 = vmatprep.subr.mxu0 0.0
  %439 = vmatpush1.msra.mxu0 0.0
  %440 = vmatprep.subr.mxu0 0.0
  %441 = vmatpush1.msra.mxu0 0.0
  %442 = vmatprep.subr.mxu0 0.0
  %443 = vmatpush1.msra.mxu0 0.0
  %444 = vmatprep.subr.mxu0 0.0
  %445 = vmatpush1.msra.mxu0 0.0
  %446 = vmatprep.subr.mxu0 0.0
  %447 = vmatpush1.msra.mxu0 0.0
  %448 = vmatprep.subr.mxu0 0.0
  %449 = vmatpush1.msra.mxu0 0.0
  %450 = vmatprep.subr.mxu0 0.0
  %451 = vmatpush1.msra.mxu0 0.0
  %452 = vmatprep.subr.mxu0 0.0
  %453 = vmatpush1.msra.mxu0 0.0
  %454 = vmatprep.subr.mxu0 0.0
  %455 = vmatpush1.msra.mxu0 0.0
  %456 = vmatprep.mubr.f32.mxu0 0.0
  %457 = vmatmul.mubr.f32.gmra.mrb[0].mxu0 %v383
  %v458 = vpop.f32.mrb[0].mxu0
  %v459 = vadd.f32 0.0, %v458
  %v460 = vpop.f32.mrb[0].mxu0
  %461 = vmatprep.mubr.f32.mxu0 0.0
  %462 = vmatmul.mubr.f32.gmra.mrb[0].mxu0 %v386
  %v463 = vpop.f32.mrb[0].mxu0
  %v464 = vadd.f32 0.0, %v463
  %v465 = vpop.f32.mrb[0].mxu0
  %466 = vdwg.mxu0
  %v467 = vld [vmem:[%s6] sm:$0x1]
  %v468 = vlaneseq
  %v469 = vshrl.u32 %v468, 7
  %v470 = vsub.s32 0, %v469
  %v471 = vrot.slane %v467, %v470
  %v472 = vmul.f32 %v459, %v471
  %v473 = vmul.f32 %v464, %v471
  %v474 = vsel %vm166, %v472, 0.0
  %475 = vadd.xlane.f32.xlu0 %v474
  %v476 = vpop.xlane.xlu0 %475
  %v477 = vsel %vm166, %v473, 0.0
  %478 = vadd.xlane.f32.xlu0 %v477
  %v479 = vpop.xlane.xlu0 %478
  %v480 = vld [vmem:[%s6 + $0x1] sm:$0x1]
  %v482 = vsel %vm166, %v480, 0
  %v485 = vsel %vm166, %v459, 0
  %v488 = vsel %vm166, %v464, 0
  %490 = vmatprep.subr.mxu0 0.0
  %491 = vmatpush1.xpose.msra.mxu0 %v485
  %492 = vmatprep.subr.mxu0 0.0
  %493 = vmatpush1.xpose.msra.mxu0 %v488
  %494 = vmatprep.subr.mxu0 0.0
  %495 = vmatpush1.xpose.msra.mxu0 0.0
  %496 = vmatprep.subr.mxu0 0.0
  %497 = vmatpush1.xpose.msra.mxu0 0.0
  %498 = vmatprep.subr.mxu0 0.0
  %499 = vmatpush1.xpose.msra.mxu0 0.0
  %500 = vmatprep.subr.mxu0 0.0
  %501 = vmatpush1.xpose.msra.mxu0 0.0
  %502 = vmatprep.subr.mxu0 0.0
  %503 = vmatpush1.xpose.msra.mxu0 0.0
  %504 = vmatprep.subr.mxu0 0.0
  %505 = vmatpush1.xpose.msra.mxu0 0.0
  %506 = vmatprep.subr.mxu0 0.0
  %507 = vmatpush1.xpose.msra.mxu0 0.0
  %508 = vmatprep.subr.mxu0 0.0
  %509 = vmatpush1.xpose.msra.mxu0 0.0
  %510 = vmatprep.subr.mxu0 0.0
  %511 = vmatpush1.xpose.msra.mxu0 0.0
  %512 = vmatprep.subr.mxu0 0.0
  %513 = vmatpush1.xpose.msra.mxu0 0.0
  %514 = vmatprep.subr.mxu0 0.0
  %515 = vmatpush1.xpose.msra.mxu0 0.0
  %516 = vmatprep.subr.mxu0 0.0
  %517 = vmatpush1.xpose.msra.mxu0 0.0
  %518 = vmatprep.subr.mxu0 0.0
  %519 = vmatpush1.xpose.msra.mxu0 0.0
  %520 = vmatprep.subr.mxu0 0.0
  %521 = vmatpush1.xpose.msra.mxu0 0.0
  %522 = vmatprep.subr.mxu0 0.0
  %523 = vmatpush1.xpose.msra.mxu0 0.0
  %524 = vmatprep.subr.mxu0 0.0
  %525 = vmatpush1.xpose.msra.mxu0 0.0
  %526 = vmatprep.subr.mxu0 0.0
  %527 = vmatpush1.xpose.msra.mxu0 0.0
  %528 = vmatprep.subr.mxu0 0.0
  %529 = vmatpush1.xpose.msra.mxu0 0.0
  %530 = vmatprep.subr.mxu0 0.0
  %531 = vmatpush1.xpose.msra.mxu0 0.0
  %532 = vmatprep.subr.mxu0 0.0
  %533 = vmatpush1.xpose.msra.mxu0 0.0
  %534 = vmatprep.subr.mxu0 0.0
  %535 = vmatpush1.xpose.msra.mxu0 0.0
  %536 = vmatprep.subr.mxu0 0.0
  %537 = vmatpush1.xpose.msra.mxu0 0.0
  %538 = vmatprep.subr.mxu0 0.0
  %539 = vmatpush1.xpose.msra.mxu0 0.0
  %540 = vmatprep.subr.mxu0 0.0
  %541 = vmatpush1.xpose.msra.mxu0 0.0
  %542 = vmatprep.subr.mxu0 0.0
  %543 = vmatpush1.xpose.msra.mxu0 0.0
  %544 = vmatprep.subr.mxu0 0.0
  %545 = vmatpush1.xpose.msra.mxu0 0.0
  %546 = vmatprep.subr.mxu0 0.0
  %547 = vmatpush1.xpose.msra.mxu0 0.0
  %548 = vmatprep.subr.mxu0 0.0
  %549 = vmatpush1.xpose.msra.mxu0 0.0
  %550 = vmatprep.subr.mxu0 0.0
  %551 = vmatpush1.xpose.msra.mxu0 0.0
  %552 = vmatprep.subr.mxu0 0.0
  %553 = vmatpush1.xpose.msra.mxu0 0.0
  %554 = vmatprep.mubr.f32.mxu0 0.0
  %555 = vmatmul.mubr.f32.gmra.mrb[0].mxu0 %v482
  %v556 = vpop.f32.mrb[0].mxu0
  %v557 = vadd.f32 0.0, %v556
  %v558 = vpop.f32.mrb[0].mxu0
  %559 = vdwg.mxu0
  %v560 = vlaneseq
  %v561 = vshrl.u32 %v560, 7
  %v562 = vsub.s32 0, %v561
  %v563 = vrot.slane %v557, %v562
  %v564 = vadd.f32 %v476, %v563
  %v565 = vadd.f32 %v479, %v563
  %v566 = vmul.f32 %v564, 0.2
  %v567 = vmul.f32 %v565, 0.2
  %v568 = vmax.f32 %v564, %v566
  %v569 = vmax.f32 %v565, %v567
  %v570 = vadd.f32 %v568, %v64
  %v571 = vadd.f32 %v569, %v65
  %v572 = vsel %vm265, %v570, -inf
  %573 = vmax.xlane.f32.xlu0 %v572
  %v574 = vpop.xlane.xlu0 %573
  %v575 = vsel %vm265, %v571, -inf
  %576 = vmax.xlane.f32.xlu0 %v575
  %v577 = vpop.xlane.xlu0 %576
  %v578 = vsub.f32 %v570, %v574
  %v579 = vsub.f32 %v571, %v577
  %v580 = vmul.f32 %v578, 1.442695
  %v581 = vpow.pop %v580
  %v582 = vmul.f32 %v579, 1.442695
  %v583 = vpow.pop %v582
  %v584 = vsel %vm265, %v581, 0.0
  %585 = vadd.xlane.f32.xlu0 %v584
  %v586 = vpop.xlane.xlu0 %585
  %v587 = vsel %vm265, %v583, 0.0
  %588 = vadd.xlane.f32.xlu0 %v587
  %v589 = vpop.xlane.xlu0 %588
  %v590 = vrcp.pop %v586
  %v591 = vrcp.pop %v589
  %v592 = vmul.f32 %v581, %v590
  %v593 = vmul.f32 %v583, %v591
  %v594 = vld [vmem:[%s7] sm:$0x1]
  %v596 = vlaneseq
  %v597 = vshrl.u32 %v596, 7
  %v598 = vsub.s32 0, %v597
  %v599 = vrot.slane %v594, %v598
  %v602 = vsel %vm265, %v592, 0
  %v605 = vsel %vm265, %v593, 0
  %607 = vmatprep.subr.mxu0 0.0
  %608 = vmatpush1.msra.mxu0 %v459
  %609 = vmatprep.subr.mxu0 0.0
  %610 = vmatpush1.msra.mxu0 %v464
  %611 = vmatprep.subr.mxu0 0.0
  %612 = vmatpush1.msra.mxu0 0.0
  %613 = vmatprep.subr.mxu0 0.0
  %614 = vmatpush1.msra.mxu0 0.0
  %615 = vmatprep.subr.mxu0 0.0
  %616 = vmatpush1.msra.mxu0 0.0
  %617 = vmatprep.subr.mxu0 0.0
  %618 = vmatpush1.msra.mxu0 0.0
  %619 = vmatprep.subr.mxu0 0.0
  %620 = vmatpush1.msra.mxu0 0.0
  %621 = vmatprep.subr.mxu0 0.0
  %622 = vmatpush1.msra.mxu0 0.0
  %623 = vmatprep.subr.mxu0 0.0
  %624 = vmatpush1.msra.mxu0 0.0
  %625 = vmatprep.subr.mxu0 0.0
  %626 = vmatpush1.msra.mxu0 0.0
  %627 = vmatprep.subr.mxu0 0.0
  %628 = vmatpush1.msra.mxu0 0.0
  %629 = vmatprep.subr.mxu0 0.0
  %630 = vmatpush1.msra.mxu0 0.0
  %631 = vmatprep.subr.mxu0 0.0
  %632 = vmatpush1.msra.mxu0 0.0
  %633 = vmatprep.subr.mxu0 0.0
  %634 = vmatpush1.msra.mxu0 0.0
  %635 = vmatprep.subr.mxu0 0.0
  %636 = vmatpush1.msra.mxu0 0.0
  %637 = vmatprep.subr.mxu0 0.0
  %638 = vmatpush1.msra.mxu0 0.0
  %639 = vmatprep.subr.mxu0 0.0
  %640 = vmatpush1.msra.mxu0 0.0
  %641 = vmatprep.subr.mxu0 0.0
  %642 = vmatpush1.msra.mxu0 0.0
  %643 = vmatprep.subr.mxu0 0.0
  %644 = vmatpush1.msra.mxu0 0.0
  %645 = vmatprep.subr.mxu0 0.0
  %646 = vmatpush1.msra.mxu0 0.0
  %647 = vmatprep.subr.mxu0 0.0
  %648 = vmatpush1.msra.mxu0 0.0
  %649 = vmatprep.subr.mxu0 0.0
  %650 = vmatpush1.msra.mxu0 0.0
  %651 = vmatprep.subr.mxu0 0.0
  %652 = vmatpush1.msra.mxu0 0.0
  %653 = vmatprep.subr.mxu0 0.0
  %654 = vmatpush1.msra.mxu0 0.0
  %655 = vmatprep.subr.mxu0 0.0
  %656 = vmatpush1.msra.mxu0 0.0
  %657 = vmatprep.subr.mxu0 0.0
  %658 = vmatpush1.msra.mxu0 0.0
  %659 = vmatprep.subr.mxu0 0.0
  %660 = vmatpush1.msra.mxu0 0.0
  %661 = vmatprep.subr.mxu0 0.0
  %662 = vmatpush1.msra.mxu0 0.0
  %663 = vmatprep.subr.mxu0 0.0
  %664 = vmatpush1.msra.mxu0 0.0
  %665 = vmatprep.subr.mxu0 0.0
  %666 = vmatpush1.msra.mxu0 0.0
  %667 = vmatprep.subr.mxu0 0.0
  %668 = vmatpush1.msra.mxu0 0.0
  %669 = vmatprep.subr.mxu0 0.0
  %670 = vmatpush1.msra.mxu0 0.0
  %671 = vmatprep.mubr.f32.mxu0 0.0
  %672 = vmatmul.mubr.f32.gmra.mrb[0].mxu0 %v602
  %v673 = vpop.f32.mrb[0].mxu0
  %v674 = vadd.f32 %v599, %v673
  %v675 = vpop.f32.mrb[0].mxu0
  %676 = vmatprep.mubr.f32.mxu0 0.0
  %677 = vmatmul.mubr.f32.gmra.mrb[0].mxu0 %v605
  %v678 = vpop.f32.mrb[0].mxu0
  %v679 = vadd.f32 %v599, %v678
  %v680 = vpop.f32.mrb[0].mxu0
  %681 = vdwg.mxu0
  %v682 = vtanh.pop %v674
  %v683 = vtanh.pop %v679
  %v684 = vld [vmem:[%s8] sm:$0xff]
  %v685 = vld [vmem:[%s8 + $0x8] sm:$0xff]
  %v686 = vld [vmem:[%s8 + $0x10] sm:$0xff]
  %v687 = vld [vmem:[%s8 + $0x18] sm:$0xf]
  %v689 = vsel %vm166, %v682, 0
  %v692 = vsel %vm166, %v683, 0
  %v695 = vsel %vm388, %v687, 0
  %697 = vmatprep.subr.mxu0 0.0
  %698 = vmatpush1.msra.mxu0 %v684
  %699 = vmatprep.subr.mxu0 0.0
  %700 = vmatpush1.msra.mxu0 %v685
  %701 = vmatprep.subr.mxu0 0.0
  %702 = vmatpush1.msra.mxu0 %v686
  %703 = vmatprep.subr.mxu0 0.0
  %704 = vmatpush1.msra.mxu0 %v695
  %705 = vmatprep.subr.mxu0 0.0
  %706 = vmatpush1.msra.mxu0 0.0
  %707 = vmatprep.subr.mxu0 0.0
  %708 = vmatpush1.msra.mxu0 0.0
  %709 = vmatprep.subr.mxu0 0.0
  %710 = vmatpush1.msra.mxu0 0.0
  %711 = vmatprep.subr.mxu0 0.0
  %712 = vmatpush1.msra.mxu0 0.0
  %713 = vmatprep.subr.mxu0 0.0
  %714 = vmatpush1.msra.mxu0 0.0
  %715 = vmatprep.subr.mxu0 0.0
  %716 = vmatpush1.msra.mxu0 0.0
  %717 = vmatprep.subr.mxu0 0.0
  %718 = vmatpush1.msra.mxu0 0.0
  %719 = vmatprep.subr.mxu0 0.0
  %720 = vmatpush1.msra.mxu0 0.0
  %721 = vmatprep.subr.mxu0 0.0
  %722 = vmatpush1.msra.mxu0 0.0
  %723 = vmatprep.subr.mxu0 0.0
  %724 = vmatpush1.msra.mxu0 0.0
  %725 = vmatprep.subr.mxu0 0.0
  %726 = vmatpush1.msra.mxu0 0.0
  %727 = vmatprep.subr.mxu0 0.0
  %728 = vmatpush1.msra.mxu0 0.0
  %729 = vmatprep.subr.mxu0 0.0
  %730 = vmatpush1.msra.mxu0 0.0
  %731 = vmatprep.subr.mxu0 0.0
  %732 = vmatpush1.msra.mxu0 0.0
  %733 = vmatprep.subr.mxu0 0.0
  %734 = vmatpush1.msra.mxu0 0.0
  %735 = vmatprep.subr.mxu0 0.0
  %736 = vmatpush1.msra.mxu0 0.0
  %737 = vmatprep.subr.mxu0 0.0
  %738 = vmatpush1.msra.mxu0 0.0
  %739 = vmatprep.subr.mxu0 0.0
  %740 = vmatpush1.msra.mxu0 0.0
  %741 = vmatprep.subr.mxu0 0.0
  %742 = vmatpush1.msra.mxu0 0.0
  %743 = vmatprep.subr.mxu0 0.0
  %744 = vmatpush1.msra.mxu0 0.0
  %745 = vmatprep.subr.mxu0 0.0
  %746 = vmatpush1.msra.mxu0 0.0
  %747 = vmatprep.subr.mxu0 0.0
  %748 = vmatpush1.msra.mxu0 0.0
  %749 = vmatprep.subr.mxu0 0.0
  %750 = vmatpush1.msra.mxu0 0.0
  %751 = vmatprep.subr.mxu0 0.0
  %752 = vmatpush1.msra.mxu0 0.0
  %753 = vmatprep.subr.mxu0 0.0
  %754 = vmatpush1.msra.mxu0 0.0
  %755 = vmatprep.subr.mxu0 0.0
  %756 = vmatpush1.msra.mxu0 0.0
  %757 = vmatprep.subr.mxu0 0.0
  %758 = vmatpush1.msra.mxu0 0.0
  %759 = vmatprep.subr.mxu0 0.0
  %760 = vmatpush1.msra.mxu0 0.0
  %761 = vmatprep.mubr.f32.mxu0 0.0
  %762 = vmatmul.mubr.f32.gmra.mrb[0].mxu0 %v689
  %v763 = vpop.f32.mrb[0].mxu0
  %v764 = vadd.f32 0.0, %v763
  %v765 = vpop.f32.mrb[0].mxu0
  %766 = vmatprep.mubr.f32.mxu0 0.0
  %767 = vmatmul.mubr.f32.gmra.mrb[0].mxu0 %v692
  %v768 = vpop.f32.mrb[0].mxu0
  %v769 = vadd.f32 0.0, %v768
  %v770 = vpop.f32.mrb[0].mxu0
  %771 = vdwg.mxu0
  %v772 = vld [vmem:[%s9] sm:$0x1]
  %v773 = vlaneseq
  %v774 = vshrl.u32 %v773, 7
  %v775 = vsub.s32 0, %v774
  %v776 = vrot.slane %v772, %v775
  %v777 = vmul.f32 %v764, %v776
  %v778 = vmul.f32 %v769, %v776
  %v779 = vsel %vm166, %v777, 0.0
  %780 = vadd.xlane.f32.xlu0 %v779
  %v781 = vpop.xlane.xlu0 %780
  %v782 = vsel %vm166, %v778, 0.0
  %783 = vadd.xlane.f32.xlu0 %v782
  %v784 = vpop.xlane.xlu0 %783
  %v785 = vld [vmem:[%s9 + $0x1] sm:$0x1]
  %v787 = vsel %vm166, %v785, 0
  %v790 = vsel %vm166, %v764, 0
  %v793 = vsel %vm166, %v769, 0
  %795 = vmatprep.subr.mxu0 0.0
  %796 = vmatpush1.xpose.msra.mxu0 %v790
  %797 = vmatprep.subr.mxu0 0.0
  %798 = vmatpush1.xpose.msra.mxu0 %v793
  %799 = vmatprep.subr.mxu0 0.0
  %800 = vmatpush1.xpose.msra.mxu0 0.0
  %801 = vmatprep.subr.mxu0 0.0
  %802 = vmatpush1.xpose.msra.mxu0 0.0
  %803 = vmatprep.subr.mxu0 0.0
  %804 = vmatpush1.xpose.msra.mxu0 0.0
  %805 = vmatprep.subr.mxu0 0.0
  %806 = vmatpush1.xpose.msra.mxu0 0.0
  %807 = vmatprep.subr.mxu0 0.0
  %808 = vmatpush1.xpose.msra.mxu0 0.0
  %809 = vmatprep.subr.mxu0 0.0
  %810 = vmatpush1.xpose.msra.mxu0 0.0
  %811 = vmatprep.subr.mxu0 0.0
  %812 = vmatpush1.xpose.msra.mxu0 0.0
  %813 = vmatprep.subr.mxu0 0.0
  %814 = vmatpush1.xpose.msra.mxu0 0.0
  %815 = vmatprep.subr.mxu0 0.0
  %816 = vmatpush1.xpose.msra.mxu0 0.0
  %817 = vmatprep.subr.mxu0 0.0
  %818 = vmatpush1.xpose.msra.mxu0 0.0
  %819 = vmatprep.subr.mxu0 0.0
  %820 = vmatpush1.xpose.msra.mxu0 0.0
  %821 = vmatprep.subr.mxu0 0.0
  %822 = vmatpush1.xpose.msra.mxu0 0.0
  %823 = vmatprep.subr.mxu0 0.0
  %824 = vmatpush1.xpose.msra.mxu0 0.0
  %825 = vmatprep.subr.mxu0 0.0
  %826 = vmatpush1.xpose.msra.mxu0 0.0
  %827 = vmatprep.subr.mxu0 0.0
  %828 = vmatpush1.xpose.msra.mxu0 0.0
  %829 = vmatprep.subr.mxu0 0.0
  %830 = vmatpush1.xpose.msra.mxu0 0.0
  %831 = vmatprep.subr.mxu0 0.0
  %832 = vmatpush1.xpose.msra.mxu0 0.0
  %833 = vmatprep.subr.mxu0 0.0
  %834 = vmatpush1.xpose.msra.mxu0 0.0
  %835 = vmatprep.subr.mxu0 0.0
  %836 = vmatpush1.xpose.msra.mxu0 0.0
  %837 = vmatprep.subr.mxu0 0.0
  %838 = vmatpush1.xpose.msra.mxu0 0.0
  %839 = vmatprep.subr.mxu0 0.0
  %840 = vmatpush1.xpose.msra.mxu0 0.0
  %841 = vmatprep.subr.mxu0 0.0
  %842 = vmatpush1.xpose.msra.mxu0 0.0
  %843 = vmatprep.subr.mxu0 0.0
  %844 = vmatpush1.xpose.msra.mxu0 0.0
  %845 = vmatprep.subr.mxu0 0.0
  %846 = vmatpush1.xpose.msra.mxu0 0.0
  %847 = vmatprep.subr.mxu0 0.0
  %848 = vmatpush1.xpose.msra.mxu0 0.0
  %849 = vmatprep.subr.mxu0 0.0
  %850 = vmatpush1.xpose.msra.mxu0 0.0
  %851 = vmatprep.subr.mxu0 0.0
  %852 = vmatpush1.xpose.msra.mxu0 0.0
  %853 = vmatprep.subr.mxu0 0.0
  %854 = vmatpush1.xpose.msra.mxu0 0.0
  %855 = vmatprep.subr.mxu0 0.0
  %856 = vmatpush1.xpose.msra.mxu0 0.0
  %857 = vmatprep.subr.mxu0 0.0
  %858 = vmatpush1.xpose.msra.mxu0 0.0
  %859 = vmatprep.mubr.f32.mxu0 0.0
  %860 = vmatmul.mubr.f32.gmra.mrb[0].mxu0 %v787
  %v861 = vpop.f32.mrb[0].mxu0
  %v862 = vadd.f32 0.0, %v861
  %v863 = vpop.f32.mrb[0].mxu0
  %864 = vdwg.mxu0
  %v865 = vlaneseq
  %v866 = vshrl.u32 %v865, 7
  %v867 = vsub.s32 0, %v866
  %v868 = vrot.slane %v862, %v867
  %v869 = vadd.f32 %v781, %v868
  %v870 = vadd.f32 %v784, %v868
  %v871 = vmul.f32 %v869, 0.2
  %v872 = vmul.f32 %v870, 0.2
  %v873 = vmax.f32 %v869, %v871
  %v874 = vmax.f32 %v870, %v872
  %v875 = vadd.f32 %v873, %v64
  %v876 = vadd.f32 %v874, %v65
  %v877 = vsel %vm265, %v875, -inf
  %878 = vmax.xlane.f32.xlu0 %v877
  %v879 = vpop.xlane.xlu0 %878
  %v880 = vsel %vm265, %v876, -inf
  %881 = vmax.xlane.f32.xlu0 %v880
  %v882 = vpop.xlane.xlu0 %881
  %v883 = vsub.f32 %v875, %v879
  %v884 = vsub.f32 %v876, %v882
  %v885 = vmul.f32 %v883, 1.442695
  %v886 = vpow.pop %v885
  %v887 = vmul.f32 %v884, 1.442695
  %v888 = vpow.pop %v887
  %v889 = vsel %vm265, %v886, 0.0
  %890 = vadd.xlane.f32.xlu0 %v889
  %v891 = vpop.xlane.xlu0 %890
  %v892 = vsel %vm265, %v888, 0.0
  %893 = vadd.xlane.f32.xlu0 %v892
  %v894 = vpop.xlane.xlu0 %893
  %v895 = vrcp.pop %v891
  %v896 = vrcp.pop %v894
  %v897 = vmul.f32 %v886, %v895
  %v898 = vmul.f32 %v888, %v896
  %v899 = vld [vmem:[%s10] sm:$0x1]
  %v901 = vlaneseq
  %v902 = vshrl.u32 %v901, 7
  %v903 = vsub.s32 0, %v902
  %v904 = vrot.slane %v899, %v903
  %v907 = vsel %vm265, %v897, 0
  %v910 = vsel %vm265, %v898, 0
  %912 = vmatprep.subr.mxu0 0.0
  %913 = vmatpush1.msra.mxu0 %v764
  %914 = vmatprep.subr.mxu0 0.0
  %915 = vmatpush1.msra.mxu0 %v769
  %916 = vmatprep.subr.mxu0 0.0
  %917 = vmatpush1.msra.mxu0 0.0
  %918 = vmatprep.subr.mxu0 0.0
  %919 = vmatpush1.msra.mxu0 0.0
  %920 = vmatprep.subr.mxu0 0.0
  %921 = vmatpush1.msra.mxu0 0.0
  %922 = vmatprep.subr.mxu0 0.0
  %923 = vmatpush1.msra.mxu0 0.0
  %924 = vmatprep.subr.mxu0 0.0
  %925 = vmatpush1.msra.mxu0 0.0
  %926 = vmatprep.subr.mxu0 0.0
  %927 = vmatpush1.msra.mxu0 0.0
  %928 = vmatprep.subr.mxu0 0.0
  %929 = vmatpush1.msra.mxu0 0.0
  %930 = vmatprep.subr.mxu0 0.0
  %931 = vmatpush1.msra.mxu0 0.0
  %932 = vmatprep.subr.mxu0 0.0
  %933 = vmatpush1.msra.mxu0 0.0
  %934 = vmatprep.subr.mxu0 0.0
  %935 = vmatpush1.msra.mxu0 0.0
  %936 = vmatprep.subr.mxu0 0.0
  %937 = vmatpush1.msra.mxu0 0.0
  %938 = vmatprep.subr.mxu0 0.0
  %939 = vmatpush1.msra.mxu0 0.0
  %940 = vmatprep.subr.mxu0 0.0
  %941 = vmatpush1.msra.mxu0 0.0
  %942 = vmatprep.subr.mxu0 0.0
  %943 = vmatpush1.msra.mxu0 0.0
  %944 = vmatprep.subr.mxu0 0.0
  %945 = vmatpush1.msra.mxu0 0.0
  %946 = vmatprep.subr.mxu0 0.0
  %947 = vmatpush1.msra.mxu0 0.0
  %948 = vmatprep.subr.mxu0 0.0
  %949 = vmatpush1.msra.mxu0 0.0
  %950 = vmatprep.subr.mxu0 0.0
  %951 = vmatpush1.msra.mxu0 0.0
  %952 = vmatprep.subr.mxu0 0.0
  %953 = vmatpush1.msra.mxu0 0.0
  %954 = vmatprep.subr.mxu0 0.0
  %955 = vmatpush1.msra.mxu0 0.0
  %956 = vmatprep.subr.mxu0 0.0
  %957 = vmatpush1.msra.mxu0 0.0
  %958 = vmatprep.subr.mxu0 0.0
  %959 = vmatpush1.msra.mxu0 0.0
  %960 = vmatprep.subr.mxu0 0.0
  %961 = vmatpush1.msra.mxu0 0.0
  %962 = vmatprep.subr.mxu0 0.0
  %963 = vmatpush1.msra.mxu0 0.0
  %964 = vmatprep.subr.mxu0 0.0
  %965 = vmatpush1.msra.mxu0 0.0
  %966 = vmatprep.subr.mxu0 0.0
  %967 = vmatpush1.msra.mxu0 0.0
  %968 = vmatprep.subr.mxu0 0.0
  %969 = vmatpush1.msra.mxu0 0.0
  %970 = vmatprep.subr.mxu0 0.0
  %971 = vmatpush1.msra.mxu0 0.0
  %972 = vmatprep.subr.mxu0 0.0
  %973 = vmatpush1.msra.mxu0 0.0
  %974 = vmatprep.subr.mxu0 0.0
  %975 = vmatpush1.msra.mxu0 0.0
  %976 = vmatprep.mubr.f32.mxu0 0.0
  %977 = vmatmul.mubr.f32.gmra.mrb[0].mxu0 %v907
  %v978 = vpop.f32.mrb[0].mxu0
  %v979 = vadd.f32 %v904, %v978
  %v980 = vpop.f32.mrb[0].mxu0
  %981 = vmatprep.mubr.f32.mxu0 0.0
  %982 = vmatmul.mubr.f32.gmra.mrb[0].mxu0 %v910
  %v983 = vpop.f32.mrb[0].mxu0
  %v984 = vadd.f32 %v904, %v983
  %v985 = vpop.f32.mrb[0].mxu0
  %986 = vdwg.mxu0
  %v987 = vtanh.pop %v979
  %v988 = vtanh.pop %v984
  %v989 = vld [vmem:[%s11] sm:$0xff]
  %v990 = vld [vmem:[%s11 + $0x8] sm:$0xff]
  %v991 = vld [vmem:[%s11 + $0x10] sm:$0xff]
  %v992 = vld [vmem:[%s11 + $0x18] sm:$0xf]
  %v994 = vsel %vm166, %v987, 0
  %v997 = vsel %vm166, %v988, 0
  %v1000 = vsel %vm388, %v992, 0
  %1002 = vmatprep.subr.mxu0 0.0
  %1003 = vmatpush1.msra.mxu0 %v989
  %1004 = vmatprep.subr.mxu0 0.0
  %1005 = vmatpush1.msra.mxu0 %v990
  %1006 = vmatprep.subr.mxu0 0.0
  %1007 = vmatpush1.msra.mxu0 %v991
  %1008 = vmatprep.subr.mxu0 0.0
  %1009 = vmatpush1.msra.mxu0 %v1000
  %1010 = vmatprep.subr.mxu0 0.0
  %1011 = vmatpush1.msra.mxu0 0.0
  %1012 = vmatprep.subr.mxu0 0.0
  %1013 = vmatpush1.msra.mxu0 0.0
  %1014 = vmatprep.subr.mxu0 0.0
  %1015 = vmatpush1.msra.mxu0 0.0
  %1016 = vmatprep.subr.mxu0 0.0
  %1017 = vmatpush1.msra.mxu0 0.0
  %1018 = vmatprep.subr.mxu0 0.0
  %1019 = vmatpush1.msra.mxu0 0.0
  %1020 = vmatprep.subr.mxu0 0.0
  %1021 = vmatpush1.msra.mxu0 0.0
  %1022 = vmatprep.subr.mxu0 0.0
  %1023 = vmatpush1.msra.mxu0 0.0
  %1024 = vmatprep.subr.mxu0 0.0
  %1025 = vmatpush1.msra.mxu0 0.0
  %1026 = vmatprep.subr.mxu0 0.0
  %1027 = vmatpush1.msra.mxu0 0.0
  %1028 = vmatprep.subr.mxu0 0.0
  %1029 = vmatpush1.msra.mxu0 0.0
  %1030 = vmatprep.subr.mxu0 0.0
  %1031 = vmatpush1.msra.mxu0 0.0
  %1032 = vmatprep.subr.mxu0 0.0
  %1033 = vmatpush1.msra.mxu0 0.0
  %1034 = vmatprep.subr.mxu0 0.0
  %1035 = vmatpush1.msra.mxu0 0.0
  %1036 = vmatprep.subr.mxu0 0.0
  %1037 = vmatpush1.msra.mxu0 0.0
  %1038 = vmatprep.subr.mxu0 0.0
  %1039 = vmatpush1.msra.mxu0 0.0
  %1040 = vmatprep.subr.mxu0 0.0
  %1041 = vmatpush1.msra.mxu0 0.0
  %1042 = vmatprep.subr.mxu0 0.0
  %1043 = vmatpush1.msra.mxu0 0.0
  %1044 = vmatprep.subr.mxu0 0.0
  %1045 = vmatpush1.msra.mxu0 0.0
  %1046 = vmatprep.subr.mxu0 0.0
  %1047 = vmatpush1.msra.mxu0 0.0
  %1048 = vmatprep.subr.mxu0 0.0
  %1049 = vmatpush1.msra.mxu0 0.0
  %1050 = vmatprep.subr.mxu0 0.0
  %1051 = vmatpush1.msra.mxu0 0.0
  %1052 = vmatprep.subr.mxu0 0.0
  %1053 = vmatpush1.msra.mxu0 0.0
  %1054 = vmatprep.subr.mxu0 0.0
  %1055 = vmatpush1.msra.mxu0 0.0
  %1056 = vmatprep.subr.mxu0 0.0
  %1057 = vmatpush1.msra.mxu0 0.0
  %1058 = vmatprep.subr.mxu0 0.0
  %1059 = vmatpush1.msra.mxu0 0.0
  %1060 = vmatprep.subr.mxu0 0.0
  %1061 = vmatpush1.msra.mxu0 0.0
  %1062 = vmatprep.subr.mxu0 0.0
  %1063 = vmatpush1.msra.mxu0 0.0
  %1064 = vmatprep.subr.mxu0 0.0
  %1065 = vmatpush1.msra.mxu0 0.0
  %1066 = vmatprep.mubr.f32.mxu0 0.0
  %1067 = vmatmul.mubr.f32.gmra.mrb[0].mxu0 %v994
  %v1068 = vpop.f32.mrb[0].mxu0
  %v1069 = vadd.f32 0.0, %v1068
  %v1070 = vpop.f32.mrb[0].mxu0
  %1071 = vmatprep.mubr.f32.mxu0 0.0
  %1072 = vmatmul.mubr.f32.gmra.mrb[0].mxu0 %v997
  %v1073 = vpop.f32.mrb[0].mxu0
  %v1074 = vadd.f32 0.0, %v1073
  %v1075 = vpop.f32.mrb[0].mxu0
  %1076 = vdwg.mxu0
  %v1077 = vld [vmem:[%s12] sm:$0x1]
  %v1078 = vlaneseq
  %v1079 = vshrl.u32 %v1078, 7
  %v1080 = vsub.s32 0, %v1079
  %v1081 = vrot.slane %v1077, %v1080
  %v1082 = vmul.f32 %v1069, %v1081
  %v1083 = vmul.f32 %v1074, %v1081
  %v1084 = vsel %vm166, %v1082, 0.0
  %1085 = vadd.xlane.f32.xlu0 %v1084
  %v1086 = vpop.xlane.xlu0 %1085
  %v1087 = vsel %vm166, %v1083, 0.0
  %1088 = vadd.xlane.f32.xlu0 %v1087
  %v1089 = vpop.xlane.xlu0 %1088
  %v1090 = vld [vmem:[%s12 + $0x1] sm:$0x1]
  %v1092 = vsel %vm166, %v1090, 0
  %v1095 = vsel %vm166, %v1069, 0
  %v1098 = vsel %vm166, %v1074, 0
  %1100 = vmatprep.subr.mxu0 0.0
  %1101 = vmatpush1.xpose.msra.mxu0 %v1095
  %1102 = vmatprep.subr.mxu0 0.0
  %1103 = vmatpush1.xpose.msra.mxu0 %v1098
  %1104 = vmatprep.subr.mxu0 0.0
  %1105 = vmatpush1.xpose.msra.mxu0 0.0
  %1106 = vmatprep.subr.mxu0 0.0
  %1107 = vmatpush1.xpose.msra.mxu0 0.0
  %1108 = vmatprep.subr.mxu0 0.0
  %1109 = vmatpush1.xpose.msra.mxu0 0.0
  %1110 = vmatprep.subr.mxu0 0.0
  %1111 = vmatpush1.xpose.msra.mxu0 0.0
  %1112 = vmatprep.subr.mxu0 0.0
  %1113 = vmatpush1.xpose.msra.mxu0 0.0
  %1114 = vmatprep.subr.mxu0 0.0
  %1115 = vmatpush1.xpose.msra.mxu0 0.0
  %1116 = vmatprep.subr.mxu0 0.0
  %1117 = vmatpush1.xpose.msra.mxu0 0.0
  %1118 = vmatprep.subr.mxu0 0.0
  %1119 = vmatpush1.xpose.msra.mxu0 0.0
  %1120 = vmatprep.subr.mxu0 0.0
  %1121 = vmatpush1.xpose.msra.mxu0 0.0
  %1122 = vmatprep.subr.mxu0 0.0
  %1123 = vmatpush1.xpose.msra.mxu0 0.0
  %1124 = vmatprep.subr.mxu0 0.0
  %1125 = vmatpush1.xpose.msra.mxu0 0.0
  %1126 = vmatprep.subr.mxu0 0.0
  %1127 = vmatpush1.xpose.msra.mxu0 0.0
  %1128 = vmatprep.subr.mxu0 0.0
  %1129 = vmatpush1.xpose.msra.mxu0 0.0
  %1130 = vmatprep.subr.mxu0 0.0
  %1131 = vmatpush1.xpose.msra.mxu0 0.0
  %1132 = vmatprep.subr.mxu0 0.0
  %1133 = vmatpush1.xpose.msra.mxu0 0.0
  %1134 = vmatprep.subr.mxu0 0.0
  %1135 = vmatpush1.xpose.msra.mxu0 0.0
  %1136 = vmatprep.subr.mxu0 0.0
  %1137 = vmatpush1.xpose.msra.mxu0 0.0
  %1138 = vmatprep.subr.mxu0 0.0
  %1139 = vmatpush1.xpose.msra.mxu0 0.0
  %1140 = vmatprep.subr.mxu0 0.0
  %1141 = vmatpush1.xpose.msra.mxu0 0.0
  %1142 = vmatprep.subr.mxu0 0.0
  %1143 = vmatpush1.xpose.msra.mxu0 0.0
  %1144 = vmatprep.subr.mxu0 0.0
  %1145 = vmatpush1.xpose.msra.mxu0 0.0
  %1146 = vmatprep.subr.mxu0 0.0
  %1147 = vmatpush1.xpose.msra.mxu0 0.0
  %1148 = vmatprep.subr.mxu0 0.0
  %1149 = vmatpush1.xpose.msra.mxu0 0.0
  %1150 = vmatprep.subr.mxu0 0.0
  %1151 = vmatpush1.xpose.msra.mxu0 0.0
  %1152 = vmatprep.subr.mxu0 0.0
  %1153 = vmatpush1.xpose.msra.mxu0 0.0
  %1154 = vmatprep.subr.mxu0 0.0
  %1155 = vmatpush1.xpose.msra.mxu0 0.0
  %1156 = vmatprep.subr.mxu0 0.0
  %1157 = vmatpush1.xpose.msra.mxu0 0.0
  %1158 = vmatprep.subr.mxu0 0.0
  %1159 = vmatpush1.xpose.msra.mxu0 0.0
  %1160 = vmatprep.subr.mxu0 0.0
  %1161 = vmatpush1.xpose.msra.mxu0 0.0
  %1162 = vmatprep.subr.mxu0 0.0
  %1163 = vmatpush1.xpose.msra.mxu0 0.0
  %1164 = vmatprep.mubr.f32.mxu0 0.0
  %1165 = vmatmul.mubr.f32.gmra.mrb[0].mxu0 %v1092
  %v1166 = vpop.f32.mrb[0].mxu0
  %v1167 = vadd.f32 0.0, %v1166
  %v1168 = vpop.f32.mrb[0].mxu0
  %1169 = vdwg.mxu0
  %v1170 = vlaneseq
  %v1171 = vshrl.u32 %v1170, 7
  %v1172 = vsub.s32 0, %v1171
  %v1173 = vrot.slane %v1167, %v1172
  %v1174 = vadd.f32 %v1086, %v1173
  %v1175 = vadd.f32 %v1089, %v1173
  %v1176 = vmul.f32 %v1174, 0.2
  %v1177 = vmul.f32 %v1175, 0.2
  %v1178 = vmax.f32 %v1174, %v1176
  %v1179 = vmax.f32 %v1175, %v1177
  %v1180 = vadd.f32 %v1178, %v64
  %v1181 = vadd.f32 %v1179, %v65
  %v1182 = vsel %vm265, %v1180, -inf
  %1183 = vmax.xlane.f32.xlu0 %v1182
  %v1184 = vpop.xlane.xlu0 %1183
  %v1185 = vsel %vm265, %v1181, -inf
  %1186 = vmax.xlane.f32.xlu0 %v1185
  %v1187 = vpop.xlane.xlu0 %1186
  %v1188 = vsub.f32 %v1180, %v1184
  %v1189 = vsub.f32 %v1181, %v1187
  %v1190 = vmul.f32 %v1188, 1.442695
  %v1191 = vpow.pop %v1190
  %v1192 = vmul.f32 %v1189, 1.442695
  %v1193 = vpow.pop %v1192
  %v1194 = vsel %vm265, %v1191, 0.0
  %1195 = vadd.xlane.f32.xlu0 %v1194
  %v1196 = vpop.xlane.xlu0 %1195
  %v1197 = vsel %vm265, %v1193, 0.0
  %1198 = vadd.xlane.f32.xlu0 %v1197
  %v1199 = vpop.xlane.xlu0 %1198
  %v1200 = vrcp.pop %v1196
  %v1201 = vrcp.pop %v1199
  %v1202 = vmul.f32 %v1191, %v1200
  %v1203 = vmul.f32 %v1193, %v1201
  %v1204 = vld [vmem:[%s13] sm:$0x1]
  %v1206 = vlaneseq
  %v1207 = vshrl.u32 %v1206, 7
  %v1208 = vsub.s32 0, %v1207
  %v1209 = vrot.slane %v1204, %v1208
  %v1212 = vsel %vm265, %v1202, 0
  %v1215 = vsel %vm265, %v1203, 0
  %1217 = vmatprep.subr.mxu0 0.0
  %1218 = vmatpush1.msra.mxu0 %v1069
  %1219 = vmatprep.subr.mxu0 0.0
  %1220 = vmatpush1.msra.mxu0 %v1074
  %1221 = vmatprep.subr.mxu0 0.0
  %1222 = vmatpush1.msra.mxu0 0.0
  %1223 = vmatprep.subr.mxu0 0.0
  %1224 = vmatpush1.msra.mxu0 0.0
  %1225 = vmatprep.subr.mxu0 0.0
  %1226 = vmatpush1.msra.mxu0 0.0
  %1227 = vmatprep.subr.mxu0 0.0
  %1228 = vmatpush1.msra.mxu0 0.0
  %1229 = vmatprep.subr.mxu0 0.0
  %1230 = vmatpush1.msra.mxu0 0.0
  %1231 = vmatprep.subr.mxu0 0.0
  %1232 = vmatpush1.msra.mxu0 0.0
  %1233 = vmatprep.subr.mxu0 0.0
  %1234 = vmatpush1.msra.mxu0 0.0
  %1235 = vmatprep.subr.mxu0 0.0
  %1236 = vmatpush1.msra.mxu0 0.0
  %1237 = vmatprep.subr.mxu0 0.0
  %1238 = vmatpush1.msra.mxu0 0.0
  %1239 = vmatprep.subr.mxu0 0.0
  %1240 = vmatpush1.msra.mxu0 0.0
  %1241 = vmatprep.subr.mxu0 0.0
  %1242 = vmatpush1.msra.mxu0 0.0
  %1243 = vmatprep.subr.mxu0 0.0
  %1244 = vmatpush1.msra.mxu0 0.0
  %1245 = vmatprep.subr.mxu0 0.0
  %1246 = vmatpush1.msra.mxu0 0.0
  %1247 = vmatprep.subr.mxu0 0.0
  %1248 = vmatpush1.msra.mxu0 0.0
  %1249 = vmatprep.subr.mxu0 0.0
  %1250 = vmatpush1.msra.mxu0 0.0
  %1251 = vmatprep.subr.mxu0 0.0
  %1252 = vmatpush1.msra.mxu0 0.0
  %1253 = vmatprep.subr.mxu0 0.0
  %1254 = vmatpush1.msra.mxu0 0.0
  %1255 = vmatprep.subr.mxu0 0.0
  %1256 = vmatpush1.msra.mxu0 0.0
  %1257 = vmatprep.subr.mxu0 0.0
  %1258 = vmatpush1.msra.mxu0 0.0
  %1259 = vmatprep.subr.mxu0 0.0
  %1260 = vmatpush1.msra.mxu0 0.0
  %1261 = vmatprep.subr.mxu0 0.0
  %1262 = vmatpush1.msra.mxu0 0.0
  %1263 = vmatprep.subr.mxu0 0.0
  %1264 = vmatpush1.msra.mxu0 0.0
  %1265 = vmatprep.subr.mxu0 0.0
  %1266 = vmatpush1.msra.mxu0 0.0
  %1267 = vmatprep.subr.mxu0 0.0
  %1268 = vmatpush1.msra.mxu0 0.0
  %1269 = vmatprep.subr.mxu0 0.0
  %1270 = vmatpush1.msra.mxu0 0.0
  %1271 = vmatprep.subr.mxu0 0.0
  %1272 = vmatpush1.msra.mxu0 0.0
  %1273 = vmatprep.subr.mxu0 0.0
  %1274 = vmatpush1.msra.mxu0 0.0
  %1275 = vmatprep.subr.mxu0 0.0
  %1276 = vmatpush1.msra.mxu0 0.0
  %1277 = vmatprep.subr.mxu0 0.0
  %1278 = vmatpush1.msra.mxu0 0.0
  %1279 = vmatprep.subr.mxu0 0.0
  %1280 = vmatpush1.msra.mxu0 0.0
  %1281 = vmatprep.mubr.f32.mxu0 0.0
  %1282 = vmatmul.mubr.f32.gmra.mrb[0].mxu0 %v1212
  %v1283 = vpop.f32.mrb[0].mxu0
  %v1284 = vadd.f32 %v1209, %v1283
  %v1285 = vpop.f32.mrb[0].mxu0
  %1286 = vmatprep.mubr.f32.mxu0 0.0
  %1287 = vmatmul.mubr.f32.gmra.mrb[0].mxu0 %v1215
  %v1288 = vpop.f32.mrb[0].mxu0
  %v1289 = vadd.f32 %v1209, %v1288
  %v1290 = vpop.f32.mrb[0].mxu0
  %1291 = vdwg.mxu0
  %v1292 = vtanh.pop %v1284
  %v1293 = vtanh.pop %v1289
  %v1294 = vld [vmem:[%s14] sm:$0xff]
  %v1295 = vld [vmem:[%s14 + $0x8] sm:$0xff]
  %v1296 = vld [vmem:[%s14 + $0x10] sm:$0xff]
  %v1297 = vld [vmem:[%s14 + $0x18] sm:$0xf]
  %v1299 = vsel %vm166, %v1292, 0
  %v1302 = vsel %vm166, %v1293, 0
  %v1305 = vsel %vm388, %v1297, 0
  %1307 = vmatprep.subr.mxu0 0.0
  %1308 = vmatpush1.msra.mxu0 %v1294
  %1309 = vmatprep.subr.mxu0 0.0
  %1310 = vmatpush1.msra.mxu0 %v1295
  %1311 = vmatprep.subr.mxu0 0.0
  %1312 = vmatpush1.msra.mxu0 %v1296
  %1313 = vmatprep.subr.mxu0 0.0
  %1314 = vmatpush1.msra.mxu0 %v1305
  %1315 = vmatprep.subr.mxu0 0.0
  %1316 = vmatpush1.msra.mxu0 0.0
  %1317 = vmatprep.subr.mxu0 0.0
  %1318 = vmatpush1.msra.mxu0 0.0
  %1319 = vmatprep.subr.mxu0 0.0
  %1320 = vmatpush1.msra.mxu0 0.0
  %1321 = vmatprep.subr.mxu0 0.0
  %1322 = vmatpush1.msra.mxu0 0.0
  %1323 = vmatprep.subr.mxu0 0.0
  %1324 = vmatpush1.msra.mxu0 0.0
  %1325 = vmatprep.subr.mxu0 0.0
  %1326 = vmatpush1.msra.mxu0 0.0
  %1327 = vmatprep.subr.mxu0 0.0
  %1328 = vmatpush1.msra.mxu0 0.0
  %1329 = vmatprep.subr.mxu0 0.0
  %1330 = vmatpush1.msra.mxu0 0.0
  %1331 = vmatprep.subr.mxu0 0.0
  %1332 = vmatpush1.msra.mxu0 0.0
  %1333 = vmatprep.subr.mxu0 0.0
  %1334 = vmatpush1.msra.mxu0 0.0
  %1335 = vmatprep.subr.mxu0 0.0
  %1336 = vmatpush1.msra.mxu0 0.0
  %1337 = vmatprep.subr.mxu0 0.0
  %1338 = vmatpush1.msra.mxu0 0.0
  %1339 = vmatprep.subr.mxu0 0.0
  %1340 = vmatpush1.msra.mxu0 0.0
  %1341 = vmatprep.subr.mxu0 0.0
  %1342 = vmatpush1.msra.mxu0 0.0
  %1343 = vmatprep.subr.mxu0 0.0
  %1344 = vmatpush1.msra.mxu0 0.0
  %1345 = vmatprep.subr.mxu0 0.0
  %1346 = vmatpush1.msra.mxu0 0.0
  %1347 = vmatprep.subr.mxu0 0.0
  %1348 = vmatpush1.msra.mxu0 0.0
  %1349 = vmatprep.subr.mxu0 0.0
  %1350 = vmatpush1.msra.mxu0 0.0
  %1351 = vmatprep.subr.mxu0 0.0
  %1352 = vmatpush1.msra.mxu0 0.0
  %1353 = vmatprep.subr.mxu0 0.0
  %1354 = vmatpush1.msra.mxu0 0.0
  %1355 = vmatprep.subr.mxu0 0.0
  %1356 = vmatpush1.msra.mxu0 0.0
  %1357 = vmatprep.subr.mxu0 0.0
  %1358 = vmatpush1.msra.mxu0 0.0
  %1359 = vmatprep.subr.mxu0 0.0
  %1360 = vmatpush1.msra.mxu0 0.0
  %1361 = vmatprep.subr.mxu0 0.0
  %1362 = vmatpush1.msra.mxu0 0.0
  %1363 = vmatprep.subr.mxu0 0.0
  %1364 = vmatpush1.msra.mxu0 0.0
  %1365 = vmatprep.subr.mxu0 0.0
  %1366 = vmatpush1.msra.mxu0 0.0
  %1367 = vmatprep.subr.mxu0 0.0
  %1368 = vmatpush1.msra.mxu0 0.0
  %1369 = vmatprep.subr.mxu0 0.0
  %1370 = vmatpush1.msra.mxu0 0.0
  %1371 = vmatprep.mubr.f32.mxu0 0.0
  %1372 = vmatmul.mubr.f32.gmra.mrb[0].mxu0 %v1299
  %v1373 = vpop.f32.mrb[0].mxu0
  %v1374 = vadd.f32 0.0, %v1373
  %v1375 = vpop.f32.mrb[0].mxu0
  %1376 = vmatprep.mubr.f32.mxu0 0.0
  %1377 = vmatmul.mubr.f32.gmra.mrb[0].mxu0 %v1302
  %v1378 = vpop.f32.mrb[0].mxu0
  %v1379 = vadd.f32 0.0, %v1378
  %v1380 = vpop.f32.mrb[0].mxu0
  %1381 = vdwg.mxu0
  %v1382 = vld [vmem:[%s15] sm:$0x1]
  %v1383 = vlaneseq
  %v1384 = vshrl.u32 %v1383, 7
  %v1385 = vsub.s32 0, %v1384
  %v1386 = vrot.slane %v1382, %v1385
  %v1387 = vmul.f32 %v1374, %v1386
  %v1388 = vmul.f32 %v1379, %v1386
  %v1389 = vsel %vm166, %v1387, 0.0
  %1390 = vadd.xlane.f32.xlu0 %v1389
  %v1391 = vpop.xlane.xlu0 %1390
  %v1392 = vsel %vm166, %v1388, 0.0
  %1393 = vadd.xlane.f32.xlu0 %v1392
  %v1394 = vpop.xlane.xlu0 %1393
  %v1395 = vld [vmem:[%s15 + $0x1] sm:$0x1]
  %v1397 = vsel %vm166, %v1395, 0
  %v1400 = vsel %vm166, %v1374, 0
  %v1403 = vsel %vm166, %v1379, 0
  %1405 = vmatprep.subr.mxu0 0.0
  %1406 = vmatpush1.xpose.msra.mxu0 %v1400
  %1407 = vmatprep.subr.mxu0 0.0
  %1408 = vmatpush1.xpose.msra.mxu0 %v1403
  %1409 = vmatprep.subr.mxu0 0.0
  %1410 = vmatpush1.xpose.msra.mxu0 0.0
  %1411 = vmatprep.subr.mxu0 0.0
  %1412 = vmatpush1.xpose.msra.mxu0 0.0
  %1413 = vmatprep.subr.mxu0 0.0
  %1414 = vmatpush1.xpose.msra.mxu0 0.0
  %1415 = vmatprep.subr.mxu0 0.0
  %1416 = vmatpush1.xpose.msra.mxu0 0.0
  %1417 = vmatprep.subr.mxu0 0.0
  %1418 = vmatpush1.xpose.msra.mxu0 0.0
  %1419 = vmatprep.subr.mxu0 0.0
  %1420 = vmatpush1.xpose.msra.mxu0 0.0
  %1421 = vmatprep.subr.mxu0 0.0
  %1422 = vmatpush1.xpose.msra.mxu0 0.0
  %1423 = vmatprep.subr.mxu0 0.0
  %1424 = vmatpush1.xpose.msra.mxu0 0.0
  %1425 = vmatprep.subr.mxu0 0.0
  %1426 = vmatpush1.xpose.msra.mxu0 0.0
  %1427 = vmatprep.subr.mxu0 0.0
  %1428 = vmatpush1.xpose.msra.mxu0 0.0
  %1429 = vmatprep.subr.mxu0 0.0
  %1430 = vmatpush1.xpose.msra.mxu0 0.0
  %1431 = vmatprep.subr.mxu0 0.0
  %1432 = vmatpush1.xpose.msra.mxu0 0.0
  %1433 = vmatprep.subr.mxu0 0.0
  %1434 = vmatpush1.xpose.msra.mxu0 0.0
  %1435 = vmatprep.subr.mxu0 0.0
  %1436 = vmatpush1.xpose.msra.mxu0 0.0
  %1437 = vmatprep.subr.mxu0 0.0
  %1438 = vmatpush1.xpose.msra.mxu0 0.0
  %1439 = vmatprep.subr.mxu0 0.0
  %1440 = vmatpush1.xpose.msra.mxu0 0.0
  %1441 = vmatprep.subr.mxu0 0.0
  %1442 = vmatpush1.xpose.msra.mxu0 0.0
  %1443 = vmatprep.subr.mxu0 0.0
  %1444 = vmatpush1.xpose.msra.mxu0 0.0
  %1445 = vmatprep.subr.mxu0 0.0
  %1446 = vmatpush1.xpose.msra.mxu0 0.0
  %1447 = vmatprep.subr.mxu0 0.0
  %1448 = vmatpush1.xpose.msra.mxu0 0.0
  %1449 = vmatprep.subr.mxu0 0.0
  %1450 = vmatpush1.xpose.msra.mxu0 0.0
  %1451 = vmatprep.subr.mxu0 0.0
  %1452 = vmatpush1.xpose.msra.mxu0 0.0
  %1453 = vmatprep.subr.mxu0 0.0
  %1454 = vmatpush1.xpose.msra.mxu0 0.0
  %1455 = vmatprep.subr.mxu0 0.0
  %1456 = vmatpush1.xpose.msra.mxu0 0.0
  %1457 = vmatprep.subr.mxu0 0.0
  %1458 = vmatpush1.xpose.msra.mxu0 0.0
  %1459 = vmatprep.subr.mxu0 0.0
  %1460 = vmatpush1.xpose.msra.mxu0 0.0
  %1461 = vmatprep.subr.mxu0 0.0
  %1462 = vmatpush1.xpose.msra.mxu0 0.0
  %1463 = vmatprep.subr.mxu0 0.0
  %1464 = vmatpush1.xpose.msra.mxu0 0.0
  %1465 = vmatprep.subr.mxu0 0.0
  %1466 = vmatpush1.xpose.msra.mxu0 0.0
  %1467 = vmatprep.subr.mxu0 0.0
  %1468 = vmatpush1.xpose.msra.mxu0 0.0
  %1469 = vmatprep.mubr.f32.mxu0 0.0
  %1470 = vmatmul.mubr.f32.gmra.mrb[0].mxu0 %v1397
  %v1471 = vpop.f32.mrb[0].mxu0
  %v1472 = vadd.f32 0.0, %v1471
  %v1473 = vpop.f32.mrb[0].mxu0
  %1474 = vdwg.mxu0
  %v1475 = vlaneseq
  %v1476 = vshrl.u32 %v1475, 7
  %v1477 = vsub.s32 0, %v1476
  %v1478 = vrot.slane %v1472, %v1477
  %v1479 = vadd.f32 %v1391, %v1478
  %v1480 = vadd.f32 %v1394, %v1478
  %v1481 = vmul.f32 %v1479, 0.2
  %v1482 = vmul.f32 %v1480, 0.2
  %v1483 = vmax.f32 %v1479, %v1481
  %v1484 = vmax.f32 %v1480, %v1482
  %v1485 = vadd.f32 %v1483, %v64
  %v1486 = vadd.f32 %v1484, %v65
  %v1487 = vsel %vm265, %v1485, -inf
  %1488 = vmax.xlane.f32.xlu0 %v1487
  %v1489 = vpop.xlane.xlu0 %1488
  %v1490 = vsel %vm265, %v1486, -inf
  %1491 = vmax.xlane.f32.xlu0 %v1490
  %v1492 = vpop.xlane.xlu0 %1491
  %v1493 = vsub.f32 %v1485, %v1489
  %v1494 = vsub.f32 %v1486, %v1492
  %v1495 = vmul.f32 %v1493, 1.442695
  %v1496 = vpow.pop %v1495
  %v1497 = vmul.f32 %v1494, 1.442695
  %v1498 = vpow.pop %v1497
  %v1499 = vsel %vm265, %v1496, 0.0
  %1500 = vadd.xlane.f32.xlu0 %v1499
  %v1501 = vpop.xlane.xlu0 %1500
  %v1502 = vsel %vm265, %v1498, 0.0
  %1503 = vadd.xlane.f32.xlu0 %v1502
  %v1504 = vpop.xlane.xlu0 %1503
  %v1505 = vrcp.pop %v1501
  %v1506 = vrcp.pop %v1504
  %v1507 = vmul.f32 %v1496, %v1505
  %v1508 = vmul.f32 %v1498, %v1506
  %v1509 = vld [vmem:[%s16] sm:$0x1]
  %v1511 = vlaneseq
  %v1512 = vshrl.u32 %v1511, 7
  %v1513 = vsub.s32 0, %v1512
  %v1514 = vrot.slane %v1509, %v1513
  %v1517 = vsel %vm265, %v1507, 0
  %v1520 = vsel %vm265, %v1508, 0
  %1522 = vmatprep.subr.mxu0 0.0
  %1523 = vmatpush1.msra.mxu0 %v1374
  %1524 = vmatprep.subr.mxu0 0.0
  %1525 = vmatpush1.msra.mxu0 %v1379
  %1526 = vmatprep.subr.mxu0 0.0
  %1527 = vmatpush1.msra.mxu0 0.0
  %1528 = vmatprep.subr.mxu0 0.0
  %1529 = vmatpush1.msra.mxu0 0.0
  %1530 = vmatprep.subr.mxu0 0.0
  %1531 = vmatpush1.msra.mxu0 0.0
  %1532 = vmatprep.subr.mxu0 0.0
  %1533 = vmatpush1.msra.mxu0 0.0
  %1534 = vmatprep.subr.mxu0 0.0
  %1535 = vmatpush1.msra.mxu0 0.0
  %1536 = vmatprep.subr.mxu0 0.0
  %1537 = vmatpush1.msra.mxu0 0.0
  %1538 = vmatprep.subr.mxu0 0.0
  %1539 = vmatpush1.msra.mxu0 0.0
  %1540 = vmatprep.subr.mxu0 0.0
  %1541 = vmatpush1.msra.mxu0 0.0
  %1542 = vmatprep.subr.mxu0 0.0
  %1543 = vmatpush1.msra.mxu0 0.0
  %1544 = vmatprep.subr.mxu0 0.0
  %1545 = vmatpush1.msra.mxu0 0.0
  %1546 = vmatprep.subr.mxu0 0.0
  %1547 = vmatpush1.msra.mxu0 0.0
  %1548 = vmatprep.subr.mxu0 0.0
  %1549 = vmatpush1.msra.mxu0 0.0
  %1550 = vmatprep.subr.mxu0 0.0
  %1551 = vmatpush1.msra.mxu0 0.0
  %1552 = vmatprep.subr.mxu0 0.0
  %1553 = vmatpush1.msra.mxu0 0.0
  %1554 = vmatprep.subr.mxu0 0.0
  %1555 = vmatpush1.msra.mxu0 0.0
  %1556 = vmatprep.subr.mxu0 0.0
  %1557 = vmatpush1.msra.mxu0 0.0
  %1558 = vmatprep.subr.mxu0 0.0
  %1559 = vmatpush1.msra.mxu0 0.0
  %1560 = vmatprep.subr.mxu0 0.0
  %1561 = vmatpush1.msra.mxu0 0.0
  %1562 = vmatprep.subr.mxu0 0.0
  %1563 = vmatpush1.msra.mxu0 0.0
  %1564 = vmatprep.subr.mxu0 0.0
  %1565 = vmatpush1.msra.mxu0 0.0
  %1566 = vmatprep.subr.mxu0 0.0
  %1567 = vmatpush1.msra.mxu0 0.0
  %1568 = vmatprep.subr.mxu0 0.0
  %1569 = vmatpush1.msra.mxu0 0.0
  %1570 = vmatprep.subr.mxu0 0.0
  %1571 = vmatpush1.msra.mxu0 0.0
  %1572 = vmatprep.subr.mxu0 0.0
  %1573 = vmatpush1.msra.mxu0 0.0
  %1574 = vmatprep.subr.mxu0 0.0
  %1575 = vmatpush1.msra.mxu0 0.0
  %1576 = vmatprep.subr.mxu0 0.0
  %1577 = vmatpush1.msra.mxu0 0.0
  %1578 = vmatprep.subr.mxu0 0.0
  %1579 = vmatpush1.msra.mxu0 0.0
  %1580 = vmatprep.subr.mxu0 0.0
  %1581 = vmatpush1.msra.mxu0 0.0
  %1582 = vmatprep.subr.mxu0 0.0
  %1583 = vmatpush1.msra.mxu0 0.0
  %1584 = vmatprep.subr.mxu0 0.0
  %1585 = vmatpush1.msra.mxu0 0.0
  %1586 = vmatprep.mubr.f32.mxu0 0.0
  %1587 = vmatmul.mubr.f32.gmra.mrb[0].mxu0 %v1517
  %v1588 = vpop.f32.mrb[0].mxu0
  %v1589 = vadd.f32 %v1514, %v1588
  %v1590 = vpop.f32.mrb[0].mxu0
  %1591 = vmatprep.mubr.f32.mxu0 0.0
  %1592 = vmatmul.mubr.f32.gmra.mrb[0].mxu0 %v1520
  %v1593 = vpop.f32.mrb[0].mxu0
  %v1594 = vadd.f32 %v1514, %v1593
  %v1595 = vpop.f32.mrb[0].mxu0
  %1596 = vdwg.mxu0
  %v1597 = vtanh.pop %v1589
  %v1598 = vtanh.pop %v1594
  %v1599 = vld [vmem:[%s17] sm:$0xff]
  %v1600 = vld [vmem:[%s17 + $0x8] sm:$0xff]
  %v1601 = vld [vmem:[%s17 + $0x10] sm:$0xff]
  %v1602 = vld [vmem:[%s17 + $0x18] sm:$0xf]
  %v1603 = vld [vmem:[#allocation2] sm:$0x1]
  %v1605 = vlaneseq
  %v1606 = vshrl.u32 %v1605, 7
  %v1607 = vsub.s32 0, %v1606
  %v1608 = vrot.slane %v1603, %v1607
  %v1611 = vsel %vm166, %v1597, 0
  %v1614 = vsel %vm166, %v1598, 0
  %v1617 = vsel %vm388, %v1602, 0
  %1619 = vmatprep.subr.mxu0 0.0
  %1620 = vmatpush1.msra.mxu0 %v1599
  %1621 = vmatprep.subr.mxu0 0.0
  %1622 = vmatpush1.msra.mxu0 %v1600
  %1623 = vmatprep.subr.mxu0 0.0
  %1624 = vmatpush1.msra.mxu0 %v1601
  %1625 = vmatprep.subr.mxu0 0.0
  %1626 = vmatpush1.msra.mxu0 %v1617
  %1627 = vmatprep.subr.mxu0 0.0
  %1628 = vmatpush1.msra.mxu0 0.0
  %1629 = vmatprep.subr.mxu0 0.0
  %1630 = vmatpush1.msra.mxu0 0.0
  %1631 = vmatprep.subr.mxu0 0.0
  %1632 = vmatpush1.msra.mxu0 0.0
  %1633 = vmatprep.subr.mxu0 0.0
  %1634 = vmatpush1.msra.mxu0 0.0
  %1635 = vmatprep.subr.mxu0 0.0
  %1636 = vmatpush1.msra.mxu0 0.0
  %1637 = vmatprep.subr.mxu0 0.0
  %1638 = vmatpush1.msra.mxu0 0.0
  %1639 = vmatprep.subr.mxu0 0.0
  %1640 = vmatpush1.msra.mxu0 0.0
  %1641 = vmatprep.subr.mxu0 0.0
  %1642 = vmatpush1.msra.mxu0 0.0
  %1643 = vmatprep.subr.mxu0 0.0
  %1644 = vmatpush1.msra.mxu0 0.0
  %1645 = vmatprep.subr.mxu0 0.0
  %1646 = vmatpush1.msra.mxu0 0.0
  %1647 = vmatprep.subr.mxu0 0.0
  %1648 = vmatpush1.msra.mxu0 0.0
  %1649 = vmatprep.subr.mxu0 0.0
  %1650 = vmatpush1.msra.mxu0 0.0
  %1651 = vmatprep.subr.mxu0 0.0
  %1652 = vmatpush1.msra.mxu0 0.0
  %1653 = vmatprep.subr.mxu0 0.0
  %1654 = vmatpush1.msra.mxu0 0.0
  %1655 = vmatprep.subr.mxu0 0.0
  %1656 = vmatpush1.msra.mxu0 0.0
  %1657 = vmatprep.subr.mxu0 0.0
  %1658 = vmatpush1.msra.mxu0 0.0
  %1659 = vmatprep.subr.mxu0 0.0
  %1660 = vmatpush1.msra.mxu0 0.0
  %1661 = vmatprep.subr.mxu0 0.0
  %1662 = vmatpush1.msra.mxu0 0.0
  %1663 = vmatprep.subr.mxu0 0.0
  %1664 = vmatpush1.msra.mxu0 0.0
  %1665 = vmatprep.subr.mxu0 0.0
  %1666 = vmatpush1.msra.mxu0 0.0
  %1667 = vmatprep.subr.mxu0 0.0
  %1668 = vmatpush1.msra.mxu0 0.0
  %1669 = vmatprep.subr.mxu0 0.0
  %1670 = vmatpush1.msra.mxu0 0.0
  %1671 = vmatprep.subr.mxu0 0.0
  %1672 = vmatpush1.msra.mxu0 0.0
  %1673 = vmatprep.subr.mxu0 0.0
  %1674 = vmatpush1.msra.mxu0 0.0
  %1675 = vmatprep.subr.mxu0 0.0
  %1676 = vmatpush1.msra.mxu0 0.0
  %1677 = vmatprep.subr.mxu0 0.0
  %1678 = vmatpush1.msra.mxu0 0.0
  %1679 = vmatprep.subr.mxu0 0.0
  %1680 = vmatpush1.msra.mxu0 0.0
  %1681 = vmatprep.subr.mxu0 0.0
  %1682 = vmatpush1.msra.mxu0 0.0
  %1683 = vmatprep.mubr.f32.mxu0 0.0
  %1684 = vmatmul.mubr.f32.gmra.mrb[0].mxu0 %v1611
  %v1685 = vpop.f32.mrb[0].mxu0
  %v1686 = vadd.f32 %v1608, %v1685
  %v1687 = vpop.f32.mrb[0].mxu0
  %1688 = vmatprep.mubr.f32.mxu0 0.0
  %1689 = vmatmul.mubr.f32.gmra.mrb[0].mxu0 %v1614
  %v1690 = vpop.f32.mrb[0].mxu0
  %v1691 = vadd.f32 %v1608, %v1690
  %v1692 = vpop.f32.mrb[0].mxu0
  %1693 = vdwg.mxu0
  %vm1694 = vcmask 7168
  %1695 = vst.msk [vmem:[%s19] sm:$0xff] %vm1694, %v1686
  %1696 = vst.msk [vmem:[%s19 + $0x8] sm:$0xff] %vm1694, %v1691
  // Predicated region
  $region78: #{gsr_no_pooling_forward.1} parent=0 // pred_check
    _
  $region79: #{gsr_no_pooling_forward.1} parent=0 // pred_check_branch
    %1698 = sbr.rel (0) target = $region81
  $region80: #{gsr_no_pooling_forward.1} parent=0 // pred_region
    _
  $region81: #{gsr_no_pooling_forward.1} parent=0 // pred_fallthru
    _
  // Predicated region
  $region82: #{gsr_no_pooling_forward.1} parent=0 // pred_check
    _
  $region83: #{gsr_no_pooling_forward.1} parent=0 // pred_check_branch
    %1700 = sbr.rel (0) target = $region85
  $region84: #{gsr_no_pooling_forward.1} parent=0 // pred_region
    _
  $region85: #{gsr_no_pooling_forward.1} parent=0 // pred_fallthru
    _

</llo_original>
